<compile_context>
chip_gen: v7x
topology: tpu7x:2x2x1
jax: 0.10.0
libtpu: 0.0.40
codegen_flags: <defaults>
</compile_context>

<pallas_src>
import functools

import jax
import jax.numpy as jnp
from jax.experimental import pallas as pl
from jax.experimental.pallas import tpu as pltpu

_NEG_SLOPE = 0.01   # torch.nn.LeakyReLU() default slope
_LANE = 128
_SUBLANE = 8


def _leaky_relu(x):
    # Single VPU max per element instead of compare+select.
    return jnp.maximum(x, _NEG_SLOPE * x)


def decoder_kernel(z_ref, w1_ref, b1_ref, w2_ref, b2_ref, w3_ref, b3_ref, o_ref):
    # Full 3-layer MLP for one (tb, latent) batch tile.  Matmuls run on the MXU
    # with bf16 operands + f32 accumulation; elementwise tail stays f32.
    # If z is already bf16 upstream the astype below is a no-op (no extra cost).
    z = z_ref[...]

    h = jnp.dot(z.astype(w1_ref.dtype), w1_ref[...],
                preferred_element_type=jnp.float32) + b1_ref[...]
    h = _leaky_relu(h)

    h = jnp.dot(h.astype(w2_ref.dtype), w2_ref[...],
                preferred_element_type=jnp.float32) + b2_ref[...]
    h = _leaky_relu(h)

    h = jnp.dot(h.astype(w3_ref.dtype), w3_ref[...],
                preferred_element_type=jnp.float32) + b3_ref[...]
    # Sigmoid -> exp/reciprocal on the EUP slot; VALU slots stay free.
    o_ref[...] = jax.nn.sigmoid(h).astype(o_ref.dtype)


# --------------------------------------------------------------------------
# Device / capability helpers
# --------------------------------------------------------------------------

def _num_tensorcores():
    """2 TensorCores per chip on v7x, 1 on v5e/v6e (and older)."""
    try:
        kind = jax.devices()[0].device_kind.lower()
    except Exception:
        return 1
    return 2 if ("v7" in kind or "7x" in kind) else 1


@functools.lru_cache(maxsize=None)
def _supports_single_buffering():
    """One-time probe: does this JAX/Mosaic support pipeline_mode=pl.Buffered(1)?

    Probing on a trivial kernel (not the decoder) means a genuine decoder bug
    can never be masked by a silent spec fallback."""
    def _probe(x_ref, c_ref, o_ref):
        o_ref[...] = x_ref[...] + c_ref[...]

    try:
        x = jnp.zeros((16, _LANE), jnp.float32)
        c = jnp.zeros((_SUBLANE, _LANE), jnp.float32)
        out = pl.pallas_call(
            _probe,
            out_shape=jax.ShapeDtypeStruct((16, _LANE), jnp.float32),
            grid=(2,),
            in_specs=[
                pl.BlockSpec((_SUBLANE, _LANE), lambda i: (i, 0)),
                pl.BlockSpec((_SUBLANE, _LANE), lambda i: (0, 0),
                             pipeline_mode=pl.Buffered(1)),
            ],
            out_specs=pl.BlockSpec((_SUBLANE, _LANE), lambda i: (i, 0)),
        )(x, c)
        jax.block_until_ready(out)
        return True
    except Exception:
        return False


# --------------------------------------------------------------------------
# One-time parameter preprocessing (hoisted out of the per-call path)
# --------------------------------------------------------------------------

def _pad2d(x, rows=None, cols=None):
    r = 0 if rows is None else rows - x.shape[0]
    c = 0 if cols is None else cols - x.shape[1]
    if r == 0 and c == 0:
        return x
    return jnp.pad(x, ((0, r), (0, c)))


def prepare_params(w1, b1, w2, b2, w3, b3, *, weight_dtype=jnp.bfloat16):
    """One-time preprocessing: weights stored (in, out), bf16, with the hidden
    and output feature dims zero-padded to a multiple of 128 lanes.

    Zero padding is exact for this MLP: padded hidden units get bias 0 ->
    LeakyReLU(0) = 0, and their outgoing weight rows are 0, so they never
    affect real outputs; padded output columns are sliced off by the caller."""
    latent_dim, hidden_dim = w1.shape
    output_dim = w3.shape[1]
    hidden_pad = pl.cdiv(hidden_dim, _LANE) * _LANE
    out_pad = pl.cdiv(output_dim, _LANE) * _LANE

    w1 = _pad2d(w1, cols=hidden_pad).astype(weight_dtype)
    b1 = _pad2d(b1.reshape(1, -1), cols=hidden_pad).astype(jnp.float32)
    w2 = _pad2d(w2, rows=hidden_pad, cols=hidden_pad).astype(weight_dtype)
    b2 = _pad2d(b2.reshape(1, -1), cols=hidden_pad).astype(jnp.float32)
    w3 = _pad2d(w3, rows=hidden_pad, cols=out_pad).astype(weight_dtype)
    b3 = _pad2d(b3.reshape(1, -1), cols=out_pad).astype(jnp.float32)
    return (w1, b1, w2, b2, w3, b3), output_dim


def init_params(key, latent_dim, hidden_dim, output_dim,
                *, weight_dtype=jnp.bfloat16):
    # Deterministic synthetic init (uniform, PyTorch-Linear-like scale).
    ks = jax.random.split(key, 6)

    def lin(kw, kb, fan_in, fan_out):
        bound = 1.0 / (fan_in ** 0.5)
        w = jax.random.uniform(kw, (fan_in, fan_out), jnp.float32, -bound, bound)
        b = jax.random.uniform(kb, (1, fan_out), jnp.float32, -bound, bound)
        return w, b

    w1, b1 = lin(ks[0], ks[1], latent_dim, hidden_dim)
    w2, b2 = lin(ks[2], ks[3], hidden_dim, hidden_dim)
    w3, b3 = lin(ks[4], ks[5], hidden_dim, output_dim)
    return prepare_params(w1, b1, w2, b2, w3, b3, weight_dtype=weight_dtype)


# --------------------------------------------------------------------------
# Batch tiling
# --------------------------------------------------------------------------

def _pick_batch_tile(batch8, per_row_bytes, weight_bytes, *, num_cores, target=512):
    """Largest multiple-of-8 divisor of batch8, capped by a VMEM budget and a
    512-row target; on multi-core chips (v7x) shrink until each TensorCore gets
    >= 2 grid steps so its BlockSpec pipeline can actually overlap DMA."""
    # Stay comfortably under v5e's 16 MiB default scoped VMEM (weights are
    # single-buffered; leave headroom for Mosaic-internal scratch).
    budget = 12 * (1 << 20) - weight_bytes
    budget = max(budget, _SUBLANE * per_row_bytes)          # always allow tb=8
    cap = max(_SUBLANE, min(target, budget // per_row_bytes))

    tb = _SUBLANE
    d = _SUBLANE
    limit = min(batch8, cap)
    while d <= limit:
        if batch8 % d == 0:
            tb = d
        d += _SUBLANE

    # 1-TC chips (v5e/v6e): fewer, larger steps win (each step ~0.35 us fixed
    # overhead and there's little DMA to hide).  v7x (2 TCs): >= 2 steps/core.
    min_steps = 1 if num_cores <= 1 else 2 * num_cores
    while batch8 // tb < min_steps and tb > _SUBLANE:
        nt = tb - _SUBLANE
        while nt > _SUBLANE and batch8 % nt != 0:
            nt -= _SUBLANE
        if nt < _SUBLANE or batch8 % nt != 0:
            break
        tb = nt
    return tb


# --------------------------------------------------------------------------
# Forward
# --------------------------------------------------------------------------

def decoder_forward(z, params, output_dim, *, out_dtype=jnp.float32,
                    batch_tile=None):
    """z: (B, latent_dim) f32 or bf16; params: padded tuple from prepare_params.

    Returns (B, output_dim) in out_dtype (f32 default; pass jnp.bfloat16 to
    halve the dominant output HBM write stream if downstream tolerates it)."""
    w1, b1, w2, b2, w3, b3 = params
    B, latent_dim = z.shape
    hidden_pad = w1.shape[1]
    out_pad = w3.shape[1]
    assert w1.shape[0] == latent_dim

    # Ragged-batch guard: round the batch up to a sublane multiple.
    batch8 = pl.cdiv(B, _SUBLANE) * _SUBLANE
    if batch8 != B:
        z = jnp.pad(z, ((0, batch8 - B), (0, 0)))

    out_itemsize = jnp.dtype(out_dtype).itemsize
    weight_bytes = sum(int(a.size) * a.dtype.itemsize
                       for a in (w1, b1, w2, b2, w3, b3))
    # Double-buffered z + out tiles, plus rough headroom for f32 intermediates.
    per_row_bytes = (2 * latent_dim * z.dtype.itemsize
                     + 2 * out_pad * out_itemsize
                     + 4 * hidden_pad * 4)

    if batch_tile is None:
        tb = _pick_batch_tile(batch8, per_row_bytes, weight_bytes,
                              num_cores=_num_tensorcores())
    else:
        tb = batch_tile
    assert batch8 % tb == 0 and tb % _SUBLANE == 0, "bad batch tile"
    grid = (batch8 // tb,)

    single_buf = _supports_single_buffering()
    if single_buf:
        # Grid-invariant blocks (index_map == (0,0)): single-buffer them so
        # VMEM isn't spent double-buffering data that never changes.
        def const_spec(shape):
            return pl.BlockSpec(shape, lambda i: (0, 0),
                                pipeline_mode=pl.Buffered(1))
    else:
        def const_spec(shape):
            return pl.BlockSpec(shape, lambda i: (0, 0))

    # Only raise the scoped VMEM limit if the estimated footprint needs it
    # (keeps the default limits — 16 MiB v5e / 32 MiB v6e,v7x — otherwise).
    est_vmem = (weight_bytes * (1 if single_buf else 2)
                + tb * per_row_bytes)
    vmem_limit = None
    if est_vmem > 14 * (1 << 20):
        vmem_limit = min(int(est_vmem * 1.5), 48 * (1 << 20))

    flops = 2 * batch8 * (latent_dim * hidden_pad
                          + hidden_pad * hidden_pad
                          + hidden_pad * out_pad)
    bytes_accessed = int(z.size * z.dtype.itemsize
                         + weight_bytes
                         + batch8 * out_pad * out_itemsize)

    # TODO(synk): for real decoder widths (hidden_dim >= 2048) add K/N grid
    # axes for the hidden x hidden / hidden x out matmuls with an f32 VMEM
    # accumulator (pl.when init/finalize) — w2 alone is 8–32 MiB bf16 there
    # and v7x only has 64 MiB physical VMEM per TensorCore.
    out = pl.pallas_call(
        decoder_kernel,
        out_shape=jax.ShapeDtypeStruct((batch8, out_pad), out_dtype),
        grid_spec=pltpu.PrefetchScalarGridSpec(
            num_scalar_prefetch=0,
            grid=grid,
            in_specs=[
                pl.BlockSpec((tb, latent_dim), lambda i: (i, 0)),
                const_spec((latent_dim, hidden_pad)),
                const_spec((1, hidden_pad)),
                const_spec((hidden_pad, hidden_pad)),
                const_spec((1, hidden_pad)),
                const_spec((hidden_pad, out_pad)),
                const_spec((1, out_pad)),
            ],
            out_specs=pl.BlockSpec((tb, out_pad), lambda i: (i, 0)),
        ),
        compiler_params=pltpu.CompilerParams(
            dimension_semantics=("parallel",),
            vmem_limit_bytes=vmem_limit),
        cost_estimate=pl.CostEstimate(
            flops=flops,
            transcendentals=batch8 * out_pad,
            bytes_accessed=bytes_accessed),
    )(z, w1, b1, w2, b2, w3, b3)

    return out[:B, :output_dim]


def reference_forward(z, params, output_dim):
    # Pure-JAX reference with the same dtype policy as the kernel
    # (bf16 matmul operands, f32 accumulation / elementwise tail).
    w1, b1, w2, b2, w3, b3 = params

    def dot(a, w):
        return jnp.dot(a.astype(w.dtype), w, preferred_element_type=jnp.float32)

    h = _leaky_relu(dot(z, w1) + b1)
    h = _leaky_relu(dot(h, w2) + b2)
    out = jax.nn.sigmoid(dot(h, w3) + b3)
    return out[:, :output_dim]


if __name__ == "__main__":
    latent_dim, hidden_dim, output_dim = 16, 32, 64
    batch = 256

    key = jax.random.PRNGKey(0)
    kz, kp = jax.random.split(key)
    z = jax.random.normal(kz, (batch, latent_dim), jnp.float32)
    params, out_dim = init_params(kp, latent_dim, hidden_dim, output_dim)

    out = decoder_forward(z, params, out_dim)
    out = jax.block_until_ready(out)

    ref = reference_forward(z, params, out_dim)
    assert out.shape == (batch, output_dim)
    # bf16 matmul operands -> slightly looser tolerance than pure f32; note the
    # bf16 error grows with hidden_dim (weight dtype is configurable in
    # init_params/prepare_params if full f32 fidelity is required).
    assert jnp.allclose(out, ref, atol=5e-3, rtol=5e-3), "mismatch vs JAX reference"

    print("KERNEL_OK")
</pallas_src>

<mosaic_0001>
module attributes {stable_mosaic.version = 11 : i64} {
  func.func @_probe(%arg0: i32, %arg1: memref<8x128xf32, #tpu.memory_space<vmem>>, %arg2: memref<8x128xf32, #tpu.memory_space<vmem>>, %arg3: memref<8x128xf32, #tpu.memory_space<vmem>>) attributes {dimension_semantics = [#tpu.dimension_semantics<arbitrary>], iteration_bounds = array<i64: 2>, scalar_prefetch = 0 : i64, scratch_operands = 0 : i64, tpu.core_type = #tpu.core_type<tc>, window_params = [{transform_indices = @transform_0, window_bounds = array<i64: 8, 128>}, {pipeline_mode = #tpu.pipeline_mode<synchronous>, transform_indices = @transform_1, window_bounds = array<i64: 8, 128>}, {transform_indices = @transform_2, window_bounds = array<i64: 8, 128>}]} {
    %c0 = arith.constant 0 : index
    %c0_0 = arith.constant 0 : index
    %0 = vector.load %arg1[%c0, %c0_0] : memref<8x128xf32, #tpu.memory_space<vmem>>, vector<8x128xf32>
    %c0_1 = arith.constant 0 : index
    %c0_2 = arith.constant 0 : index
    %1 = vector.load %arg2[%c0_1, %c0_2] : memref<8x128xf32, #tpu.memory_space<vmem>>, vector<8x128xf32>
    %2 = arith.addf %0, %1 : vector<8x128xf32>
    %c0_3 = arith.constant 0 : index
    %c0_4 = arith.constant 0 : index
    %3 = vector.load %arg3[%c0_3, %c0_4] : memref<8x128xf32, #tpu.memory_space<vmem>>, vector<8x128xf32>
    tpu.vector_store %arg3[%c0_3, %c0_4], %2 {strides = array<i32>} : memref<8x128xf32, #tpu.memory_space<vmem>>, vector<8x128xf32>,
    return
  }
  func.func @transform_0(%arg0: i32) -> (i32, i32) {
    %c0_i32 = arith.constant 0 : i32
    %c0_i32_0 = arith.constant 0 : i32
    return %arg0, %c0_i32 : i32, i32
  }
  func.func @transform_1(%arg0: i32) -> (i32, i32) {
    %c0_i32 = arith.constant 0 : i32
    %c0_i32_0 = arith.constant 0 : i32
    %c0_i32_1 = arith.constant 0 : i32
    return %c0_i32, %c0_i32_0 : i32, i32
  }
  func.func @transform_2(%arg0: i32) -> (i32, i32) {
    %c0_i32 = arith.constant 0 : i32
    %c0_i32_0 = arith.constant 0 : i32
    return %arg0, %c0_i32 : i32, i32
  }
}

module attributes {stable_mosaic.version = 11 : i64} {
  func.func @decoder_kernel(%arg0: i32, %arg1: memref<256x16xf32, #tpu.memory_space<vmem>>, %arg2: memref<16x128xbf16, #tpu.memory_space<vmem>>, %arg3: memref<1x128xf32, #tpu.memory_space<vmem>>, %arg4: memref<128x128xbf16, #tpu.memory_space<vmem>>, %arg5: memref<1x128xf32, #tpu.memory_space<vmem>>, %arg6: memref<128x128xbf16, #tpu.memory_space<vmem>>, %arg7: memref<1x128xf32, #tpu.memory_space<vmem>>, %arg8: memref<256x128xf32, #tpu.memory_space<vmem>>) attributes {dimension_semantics = [#tpu.dimension_semantics<parallel>], iteration_bounds = array<i64: 1>, scalar_prefetch = 0 : i64, scratch_operands = 0 : i64, tpu.core_type = #tpu.core_type<tc>, window_params = [{transform_indices = @transform_0, window_bounds = array<i64: 256, 16>}, {pipeline_mode = #tpu.pipeline_mode<synchronous>, transform_indices = @transform_1, window_bounds = array<i64: 16, 128>}, {pipeline_mode = #tpu.pipeline_mode<synchronous>, transform_indices = @transform_2, window_bounds = array<i64: 1, 128>}, {pipeline_mode = #tpu.pipeline_mode<synchronous>, transform_indices = @transform_3, window_bounds = array<i64: 128, 128>}, {pipeline_mode = #tpu.pipeline_mode<synchronous>, transform_indices = @transform_4, window_bounds = array<i64: 1, 128>}, {pipeline_mode = #tpu.pipeline_mode<synchronous>, transform_indices = @transform_5, window_bounds = array<i64: 128, 128>}, {pipeline_mode = #tpu.pipeline_mode<synchronous>, transform_indices = @transform_6, window_bounds = array<i64: 1, 128>}, {transform_indices = @transform_7, window_bounds = array<i64: 256, 128>}]} {
    %c0 = arith.constant 0 : index
    %c0_0 = arith.constant 0 : index
    %0 = vector.load %arg1[%c0, %c0_0] : memref<256x16xf32, #tpu.memory_space<vmem>>, vector<256x16xf32>
    %1 = arith.truncf %0 : vector<256x16xf32> to vector<256x16xbf16>
    %c0_1 = arith.constant 0 : index
    %c0_2 = arith.constant 0 : index
    %2 = vector.load %arg2[%c0_1, %c0_2] : memref<16x128xbf16, #tpu.memory_space<vmem>>, vector<16x128xbf16>
    %cst = arith.constant dense<0.000000e+00> : vector<256x128xf32>
    %3 = tpu.matmul %1, %2, %cst {dimension_numbers = #tpu.dot_dimension_numbers<[1], [0], [0], [1], [0, 0, 1, 1], [], []>} : vector<256x16xbf16>, vector<16x128xbf16>, vector<256x128xf32> -> vector<256x128xf32>
    %c0_3 = arith.constant 0 : index
    %c0_4 = arith.constant 0 : index
    %4 = vector.load %arg3[%c0_3, %c0_4] : memref<1x128xf32, #tpu.memory_space<vmem>>, vector<1x128xf32>
    %5 = vector.broadcast %4 : vector<1x128xf32> to vector<256x128xf32>
    %6 = arith.addf %3, %5 : vector<256x128xf32>
    %cst_5 = arith.constant 0.00999999977 : f32
    %7 = vector.broadcast %cst_5 : f32 to vector<256x128xf32>
    %8 = arith.mulf %7, %6 : vector<256x128xf32>
    %9 = arith.maximumf %6, %8 : vector<256x128xf32>
    %10 = arith.truncf %9 : vector<256x128xf32> to vector<256x128xbf16>
    %c0_6 = arith.constant 0 : index
    %c0_7 = arith.constant 0 : index
    %11 = vector.load %arg4[%c0_6, %c0_7] : memref<128x128xbf16, #tpu.memory_space<vmem>>, vector<128x128xbf16>
    %cst_8 = arith.constant dense<0.000000e+00> : vector<256x128xf32>
    %12 = tpu.matmul %10, %11, %cst_8 {dimension_numbers = #tpu.dot_dimension_numbers<[1], [0], [0], [1], [0, 0, 1, 1], [], []>} : vector<256x128xbf16>, vector<128x128xbf16>, vector<256x128xf32> -> vector<256x128xf32>
    %c0_9 = arith.constant 0 : index
    %c0_10 = arith.constant 0 : index
    %13 = vector.load %arg5[%c0_9, %c0_10] : memref<1x128xf32, #tpu.memory_space<vmem>>, vector<1x128xf32>
    %14 = vector.broadcast %13 : vector<1x128xf32> to vector<256x128xf32>
    %15 = arith.addf %12, %14 : vector<256x128xf32>
    %cst_11 = arith.constant 0.00999999977 : f32
    %16 = vector.broadcast %cst_11 : f32 to vector<256x128xf32>
    %17 = arith.mulf %16, %15 : vector<256x128xf32>
    %18 = arith.maximumf %15, %17 : vector<256x128xf32>
    %19 = arith.truncf %18 : vector<256x128xf32> to vector<256x128xbf16>
    %c0_12 = arith.constant 0 : index
    %c0_13 = arith.constant 0 : index
    %20 = vector.load %arg6[%c0_12, %c0_13] : memref<128x128xbf16, #tpu.memory_space<vmem>>, vector<128x128xbf16>
    %cst_14 = arith.constant dense<0.000000e+00> : vector<256x128xf32>
    %21 = tpu.matmul %19, %20, %cst_14 {dimension_numbers = #tpu.dot_dimension_numbers<[1], [0], [0], [1], [0, 0, 1, 1], [], []>} : vector<256x128xbf16>, vector<128x128xbf16>, vector<256x128xf32> -> vector<256x128xf32>
    %c0_15 = arith.constant 0 : index
    %c0_16 = arith.constant 0 : index
    %22 = vector.load %arg7[%c0_15, %c0_16] : memref<1x128xf32, #tpu.memory_space<vmem>>, vector<1x128xf32>
    %23 = vector.broadcast %22 : vector<1x128xf32> to vector<256x128xf32>
    %24 = arith.addf %21, %23 : vector<256x128xf32>
    %25 = arith.negf %24 : vector<256x128xf32>
    %26 = math.exp %25 : vector<256x128xf32>
    %cst_17 = arith.constant 1.000000e+00 : f32
    %27 = vector.broadcast %cst_17 : f32 to vector<256x128xf32>
    %28 = arith.addf %27, %26 : vector<256x128xf32>
    %29 = arith.divf %27, %28 : vector<256x128xf32>
    %c0_18 = arith.constant 0 : index
    %c0_19 = arith.constant 0 : index
    %30 = vector.load %arg8[%c0_18, %c0_19] : memref<256x128xf32, #tpu.memory_space<vmem>>, vector<256x128xf32>
    tpu.vector_store %arg8[%c0_18, %c0_19], %29 {strides = array<i32>} : memref<256x128xf32, #tpu.memory_space<vmem>>, vector<256x128xf32>,
    return
  }
  func.func @transform_0(%arg0: i32) -> (i32, i32) {
    %c0_i32 = arith.constant 0 : i32
    %c0_i32_0 = arith.constant 0 : i32
    return %arg0, %c0_i32 : i32, i32
  }
  func.func @transform_1(%arg0: i32) -> (i32, i32) {
    %c0_i32 = arith.constant 0 : i32
    %c0_i32_0 = arith.constant 0 : i32
    %c0_i32_1 = arith.constant 0 : i32
    return %c0_i32, %c0_i32_0 : i32, i32
  }
  func.func @transform_2(%arg0: i32) -> (i32, i32) {
    %c0_i32 = arith.constant 0 : i32
    %c0_i32_0 = arith.constant 0 : i32
    %c0_i32_1 = arith.constant 0 : i32
    return %c0_i32, %c0_i32_0 : i32, i32
  }
  func.func @transform_3(%arg0: i32) -> (i32, i32) {
    %c0_i32 = arith.constant 0 : i32
    %c0_i32_0 = arith.constant 0 : i32
    %c0_i32_1 = arith.constant 0 : i32
    return %c0_i32, %c0_i32_0 : i32, i32
  }
  func.func @transform_4(%arg0: i32) -> (i32, i32) {
    %c0_i32 = arith.constant 0 : i32
    %c0_i32_0 = arith.constant 0 : i32
    %c0_i32_1 = arith.constant 0 : i32
    return %c0_i32, %c0_i32_0 : i32, i32
  }
  func.func @transform_5(%arg0: i32) -> (i32, i32) {
    %c0_i32 = arith.constant 0 : i32
    %c0_i32_0 = arith.constant 0 : i32
    %c0_i32_1 = arith.constant 0 : i32
    return %c0_i32, %c0_i32_0 : i32, i32
  }
  func.func @transform_6(%arg0: i32) -> (i32, i32) {
    %c0_i32 = arith.constant 0 : i32
    %c0_i32_0 = arith.constant 0 : i32
    %c0_i32_1 = arith.constant 0 : i32
    return %c0_i32, %c0_i32_0 : i32, i32
  }
  func.func @transform_7(%arg0: i32) -> (i32, i32) {
    %c0_i32 = arith.constant 0 : i32
    %c0_i32_0 = arith.constant 0 : i32
    return %arg0, %c0_i32 : i32, i32
  }
}

</mosaic_0001>

<llo_original>
// kernel: tpu_custom_call.1
$region0: #{tpu_custom_call.1}
  #allocation0 [shape = 'u32[]', space=smem, size = 0x4, offset = 0x4, fixed_abs, tag = 'smem constant byte address 0x4 - core index']
  #allocation1 [shape = 'u32[144,128]{1,0:T(1,128)}', space=vmem, size = 0x12000, scoped, tag = 'internal scratch']
  %s0 = inlined_call_operand.hbm [shape: f32[16,128], index: 0, kind: input, shape index: {}]
  %s1 = inlined_call_operand.hbm [shape: f32[8,128], index: 1, kind: input, shape index: {}]
  %s2 = inlined_call_operand.hbm [shape: f32[16,128], index: 2, kind: output, shape index: {}]
  %s3 = sld [smem:[#allocation0]]
  $region49: #{tpu_custom_call.1} parent=0
    _
  %s5 = ssub.s32 1, %s3
  %s6 = scalar_select 0, %s5, %s3
  $region1: #{tpu_custom_call.1} parent=0
    #allocation2 [shape = 'u8[8192]{0}', space=vmem, size = 0x2000, scoped, tag = 'input window, operand 0']
    #allocation3 [shape = 's32[2]{0}', space=sflag, size = 0x8, scoped, tag = 'scoped memory for tpu_custom_call.1']
    #allocation4 [shape = 's32[2]{0}', space=sflag, size = 0x8, scoped, tag = 'scoped memory for tpu_custom_call.1']
    #allocation5 [shape = 'u8[4096]{0}', space=vmem, size = 0x1000, scoped, tag = 'input window, operand 1, single buffered']
    #allocation6 [shape = 's32[1]{0}', space=sflag, size = 0x4, scoped, tag = 'scoped memory for tpu_custom_call.1']
    #allocation7 [shape = 'u8[8192]{0}', space=vmem, size = 0x2000, scoped, tag = 'output window, operand 0']
    %7 = vsyncpa [#allocation3], 0
    %s8 = scalar_lea.sflag [#allocation3], 1
    %9 = vsyncpa %s8, 0
    %10 = vsyncpa [#allocation6], 0
    %11 = vsyncpa [#allocation4], 0
    %s12 = scalar_lea.sflag [#allocation4], 1
    %13 = vsyncpa %s12, 0
    loop: start=0, step=1, limit=4
    $region2: #{tpu_custom_call.1} parent=1 // loop_pre_header
      _
    $region3: #{tpu_custom_call.1} parent=1 // loop_header
      %s15 = sphi 0, %s19
      %p16 = scmp.ge.s32.totalorder %s15, 4
      %s25 = sphi 0, %s27
      %s28 = sphi 0, %s25
      %s29 = sphi 0, %s28
      %s45 = sphi 0, %s29
      %s49 = sphi 0, %s49
      %s51 = sphi 0, %s49
      %s52 = sphi 0, %s51
      %s66 = sphi 0, %s52
      %s72 = sphi 0, %s74
      %s75 = sphi 0, %s72
      %s76 = sphi 0, %s75
      %s92 = sphi 0, %s76
    $region4: #{tpu_custom_call.1} parent=1 // loop_header_branch
      %18 = sbr.rel (%p16) target = $region8
    $region5: #{tpu_custom_call.1} parent=1 // loop_body
      %s20 = ssub.s32 %s15, 1
      %s21 = ssub.s32 %s15, 2
      %s22 = sadd.s32 %s15, 1
      %s23 = ssub.s32 %s15, %s22
      %p24 = scmp.eq.s32.totalorder %s23, 0
      %s26 = sadd.s32 %s25, 1
      %s27 = scalar_select %p24, %s25, %s26
      %p30 = pneg %p24
      %p31 = scmp.eq.s32.totalorder %s15, 1
      %p32 = por %p30, %p31
      %p33 = scmp.ne.s32.totalorder %s25, %s28
      %p34 = scmp.eq.s32.totalorder %s15, 0
      %p35 = por %p33, %p34
      %p36 = scmp.ne.s32.totalorder %s25, %s28
      %p37 = scmp.eq.s32.totalorder %s20, 1
      %p38 = por %p36, %p37
      %p39 = scmp.ne.s32.totalorder %s28, %s29
      %p40 = scmp.eq.s32.totalorder %s20, 0
      %p41 = por %p39, %p40
      %p42 = scmp.ne.s32.totalorder %s28, %s29
      %p43 = scmp.eq.s32.totalorder %s21, 1
      %p44 = por %p42, %p43
      %p46 = scmp.ne.s32.totalorder %s29, %s45
      %p47 = scmp.eq.s32.totalorder %s21, 0
      %p48 = por %p46, %p47
      %s50 = sadd.s32 %s49, 1
      %p53 = scmp.eq.s32.totalorder %s15, 1
      %p54 = scmp.ne.s32.totalorder %s49, %s51
      %p55 = scmp.eq.s32.totalorder %s15, 0
      %p56 = por %p54, %p55
      %p57 = scmp.ne.s32.totalorder %s49, %s51
      %p58 = scmp.eq.s32.totalorder %s20, 1
      %p59 = por %p57, %p58
      %p60 = scmp.ne.s32.totalorder %s51, %s52
      %p61 = scmp.eq.s32.totalorder %s20, 0
      %p62 = por %p60, %p61
      %p63 = scmp.ne.s32.totalorder %s51, %s52
      %p64 = scmp.eq.s32.totalorder %s21, 1
      %p65 = por %p63, %p64
      %p67 = scmp.ne.s32.totalorder %s52, %s66
      %p68 = scmp.eq.s32.totalorder %s21, 0
      %p69 = por %p67, %p68
      %s70 = ssub.s32 %s15, %s22
      %p71 = scmp.eq.s32.totalorder %s70, 0
      %s73 = sadd.s32 %s72, 1
      %s74 = scalar_select %p71, %s72, %s73
      %p77 = pneg %p71
      %p78 = scmp.eq.s32.totalorder %s15, 1
      %p79 = por %p77, %p78
      %p80 = scmp.ne.s32.totalorder %s72, %s75
      %p81 = scmp.eq.s32.totalorder %s15, 0
      %p82 = por %p80, %p81
      %p83 = scmp.ne.s32.totalorder %s72, %s75
      %p84 = scmp.eq.s32.totalorder %s20, 1
      %p85 = por %p83, %p84
      %p86 = scmp.ne.s32.totalorder %s75, %s76
      %p87 = scmp.eq.s32.totalorder %s20, 0
      %p88 = por %p86, %p87
      %p89 = scmp.ne.s32.totalorder %s75, %s76
      %p90 = scmp.eq.s32.totalorder %s21, 1
      %p91 = por %p89, %p90
      %p93 = scmp.ne.s32.totalorder %s76, %s92
      %p94 = scmp.eq.s32.totalorder %s21, 0
      %p95 = por %p93, %p94
      %p96 = scmp.le.s32.totalorder 1, %s15
      %p97 = scmp.lt.s32.totalorder %s15, 3
      %p98 = pnand %p96, %p97
      %p99 = pneg %p98
      // Predicated region
      $region9: #{tpu_custom_call.1} parent=5 // pred_check
        _
      $region10: #{tpu_custom_call.1} parent=5 // pred_check_branch
        %101 = sbr.rel (%p98) target = $region12
      $region11: #{tpu_custom_call.1} parent=5 // pred_region
        %s102 = ssub.s32 %s15, 1
        // Predicated region
        $region13: #{tpu_custom_call.1} parent=11 // pred_check
          %p103 = pneg %p62
        $region14: #{tpu_custom_call.1} parent=11 // pred_check_branch
          %105 = sbr.rel (%p103) target = $region16
        $region15: #{tpu_custom_call.1} parent=11 // pred_region
          %s107 = ssub.s32 128, 128
          %108 = vsyncadd [#allocation6], %s107
          %s110 = sshll.u32 [#allocation5], 4
          %s111 = int_to_ptr.vmem [resolvable:$true] %s110
          %113 = dma.hbm_to_vmem [thread:$0]  %s1, 128, %s111, [#allocation6]
        $region16: #{tpu_custom_call.1} parent=11 // pred_fallthru
          _
      $region12: #{tpu_custom_call.1} parent=5 // pred_fallthru
        _
      %p114 = scmp.lt.s32.totalorder %s15, 2
      // Predicated region
      $region17: #{tpu_custom_call.1} parent=5 // pred_check
        %p115 = pneg %p114
      $region18: #{tpu_custom_call.1} parent=5 // pred_check_branch
        %117 = sbr.rel (%p115) target = $region20
      $region19: #{tpu_custom_call.1} parent=5 // pred_region
        // Predicated region
        $region21: #{tpu_custom_call.1} parent=19 // pred_check
          %p118 = pneg %p35
        $region22: #{tpu_custom_call.1} parent=19 // pred_check_branch
          %120 = sbr.rel (%p118) target = $region24
        $region23: #{tpu_custom_call.1} parent=19 // pred_region
          %s121 = sand.u32 %s25, 1
          %s122 = scalar_lea.sflag [#allocation3], %s121
          %s123 = sand.u32 %s25, 1
          %s124 = smul.addr %s123, 8
          %s125 = scalar_lea.vmem [#allocation2], %s124
          %s127 = ssub.s32 128, 128
          %128 = vsyncadd %s122, %s127
          %s129 = smul.addr %s15, 128
          %s130 = scalar_lea.hbm %s0, %s129
          %s132 = sshll.u32 %s125, 4
          %s133 = int_to_ptr.vmem [resolvable:$true] %s132
          %135 = dma.hbm_to_vmem [thread:$0]  %s130, 128, %s133, %s122
        $region24: #{tpu_custom_call.1} parent=19 // pred_fallthru
          _
      $region20: #{tpu_custom_call.1} parent=5 // pred_fallthru
        _
      %p136 = scmp.le.s32.totalorder 1, %s15
      %p137 = scmp.lt.s32.totalorder %s15, 3
      %p138 = pnand %p136, %p137
      %p139 = pneg %p138
      // Predicated region
      $region25: #{tpu_custom_call.1} parent=5 // pred_check
        _
      $region26: #{tpu_custom_call.1} parent=5 // pred_check_branch
        %141 = sbr.rel (%p138) target = $region28
      $region27: #{tpu_custom_call.1} parent=5 // pred_region
        %s142 = ssub.s32 %s15, 1
        %s143 = sand.u32 %s28, 1
        %s144 = scalar_lea.sflag [#allocation3], %s143
        %s145 = sand.u32 %s28, 1
        %s146 = smul.addr %s145, 8
        %s147 = scalar_lea.vmem [#allocation2], %s146
        // Predicated region
        $region29: #{tpu_custom_call.1} parent=27 // pred_check
          %p148 = pneg %p41
        $region30: #{tpu_custom_call.1} parent=27 // pred_check_branch
          %150 = sbr.rel (%p148) target = $region32
        $region31: #{tpu_custom_call.1} parent=27 // pred_region
          %151 = dma.done %s144, 128
        $region32: #{tpu_custom_call.1} parent=27 // pred_fallthru
          _
        // Predicated region
        $region33: #{tpu_custom_call.1} parent=27 // pred_check
          %p152 = pneg %p62
        $region34: #{tpu_custom_call.1} parent=27 // pred_check_branch
          %154 = sbr.rel (%p152) target = $region36
        $region35: #{tpu_custom_call.1} parent=27 // pred_region
          %155 = dma.done [#allocation6], 128
        $region36: #{tpu_custom_call.1} parent=27 // pred_fallthru
          _
        %s156 = sand.u32 %s28, 1
        %s157 = scalar_lea.sflag [#allocation3], %s156
        %s158 = sand.u32 %s28, 1
        %s159 = smul.addr %s158, 8
        %s160 = scalar_lea.vmem [#allocation2], %s159
        %p161 = pneg %p41
        %p162 = pneg %p38
        %p163 = pneg %p62
        %p164 = pneg %p59
        %p165 = pneg %p88
        %p166 = pneg %p85
        %s167 = sand.u32 %s75, 1
        %s168 = scalar_lea.sflag [#allocation4], %s167
        %s169 = sand.u32 %s75, 1
        %s170 = smul.addr %s169, 8
        %s171 = scalar_lea.vmem [#allocation7], %s170
        %v172 = vld [vmem:[%s147] sm:$0xff]
        %v173 = vld [vmem:[#allocation5] sm:$0xff]
        %v174 = vadd.f32 %v172, %v173
        %175 = vst [vmem:[%s171] sm:$0xff] %v174
        %s176 = sand.u32 %s75, 1
        %s177 = scalar_lea.sflag [#allocation4], %s176
        %s178 = sand.u32 %s75, 1
        %s179 = smul.addr %s178, 8
        %s180 = scalar_lea.vmem [#allocation7], %s179
        // Predicated region
        $region37: #{tpu_custom_call.1} parent=27 // pred_check
          %p181 = pneg %p85
        $region38: #{tpu_custom_call.1} parent=27 // pred_check_branch
          %183 = sbr.rel (%p181) target = $region40
        $region39: #{tpu_custom_call.1} parent=27 // pred_region
          %s185 = ssub.s32 128, 128
          %186 = vsyncadd %s177, %s185
          %s187 = smul.addr %s20, 128
          %s188 = scalar_lea.hbm %s2, %s187
          %s190 = sshll.u32 %s180, 4
          %s191 = int_to_ptr.vmem [resolvable:$true] %s190
          %193 = dma.vmem_to_hbm [thread:$0]  %s191, 128, %s188, %s177
        $region40: #{tpu_custom_call.1} parent=27 // pred_fallthru
          _
      $region28: #{tpu_custom_call.1} parent=5 // pred_fallthru
        _
      %p194 = scmp.le.s32.totalorder 2, %s15
      // Predicated region
      $region41: #{tpu_custom_call.1} parent=5 // pred_check
        %p195 = pneg %p194
      $region42: #{tpu_custom_call.1} parent=5 // pred_check_branch
        %197 = sbr.rel (%p195) target = $region44
      $region43: #{tpu_custom_call.1} parent=5 // pred_region
        %s198 = ssub.s32 %s15, 2
        // Predicated region
        $region45: #{tpu_custom_call.1} parent=43 // pred_check
          %p199 = pneg %p91
        $region46: #{tpu_custom_call.1} parent=43 // pred_check_branch
          %201 = sbr.rel (%p199) target = $region48
        $region47: #{tpu_custom_call.1} parent=43 // pred_region
          %s202 = sand.u32 %s76, 1
          %s203 = scalar_lea.sflag [#allocation4], %s202
          %s204 = sand.u32 %s76, 1
          %s205 = smul.addr %s204, 8
          %s206 = scalar_lea.vmem [#allocation7], %s205
          %207 = dma.done %s203, 128
        $region48: #{tpu_custom_call.1} parent=43 // pred_fallthru
          _
      $region44: #{tpu_custom_call.1} parent=5 // pred_fallthru
        _
    $region6: #{tpu_custom_call.1} parent=1 // loop_footer
      %s19 = sadd.s32 1, %s15
    $region7: #{tpu_custom_call.1} parent=1 // loop_footer_branch
      %14 = sbr.rel target = $region3
    $region8: #{tpu_custom_call.1} parent=1 // loop_exit
      _
    %208 = vsyncpa [#allocation3], 1
    %s209 = scalar_lea.sflag [#allocation3], 1
    %210 = vsyncpa %s209, 1
    %211 = vsyncpa [#allocation6], 1
    %212 = vsyncpa [#allocation4], 1
    %s213 = scalar_lea.sflag [#allocation4], 1
    %214 = vsyncpa %s213, 1

// kernel: tpu_custom_call.1
$region0: #{tpu_custom_call.1}
  #allocation0 [shape = 'u32[]', space=smem, size = 0x4, offset = 0x4, fixed_abs, tag = 'smem constant byte address 0x4 - core index']
  #allocation1 [shape = 'u32[144,128]{1,0:T(1,128)}', space=vmem, size = 0x12000, scoped, tag = 'internal scratch']
  %s0 = inlined_call_operand.vmem [shape: f32[256,16], index: 0, kind: input, shape index: {}]
  %s1 = inlined_call_operand.vmem [shape: bf16[16,128], index: 1, kind: input, shape index: {}]
  %s2 = inlined_call_operand.vmem [shape: f32[1,128], index: 2, kind: input, shape index: {}]
  %s3 = inlined_call_operand.vmem [shape: bf16[128,128], index: 3, kind: input, shape index: {}]
  %s4 = inlined_call_operand.vmem [shape: f32[1,128], index: 4, kind: input, shape index: {}]
  %s5 = inlined_call_operand.vmem [shape: bf16[128,128], index: 5, kind: input, shape index: {}]
  %s6 = inlined_call_operand.vmem [shape: f32[1,128], index: 6, kind: input, shape index: {}]
  %s7 = inlined_call_operand.hbm [shape: f32[256,128], index: 7, kind: output, shape index: {}]
  %s8 = sld [smem:[#allocation0]]
  $region38: #{tpu_custom_call.1} parent=0
    _
  %s10 = ssub.s32 1, %s8
  %s11 = scalar_select 0, %s10, %s8
  $region1: #{tpu_custom_call.1} parent=0
    #allocation2 [shape = 'u8[131072]{0}', space=vmem, size = 0x20000, scoped, tag = 'output window, operand 0, single buffered']
    #allocation3 [shape = 's32[1]{0}', space=sflag, size = 0x4, scoped, tag = 'scoped memory for tpu_custom_call.1']
    %12 = vsyncpa [#allocation3], 0
    // Predicated region
    $region2: #{tpu_custom_call.1} parent=1 // pred_check
      _
    $region3: #{tpu_custom_call.1} parent=1 // pred_check_branch
      %14 = sbr.rel (0) target = $region5
    $region4: #{tpu_custom_call.1} parent=1 // pred_region
      _
    $region5: #{tpu_custom_call.1} parent=1 // pred_fallthru
      _
    // Predicated region
    $region6: #{tpu_custom_call.1} parent=1 // pred_check
      _
    $region7: #{tpu_custom_call.1} parent=1 // pred_check_branch
      %16 = sbr.rel (0) target = $region9
    $region8: #{tpu_custom_call.1} parent=1 // pred_region
      _
    $region9: #{tpu_custom_call.1} parent=1 // pred_fallthru
      _
    // Predicated region
    $region10: #{tpu_custom_call.1} parent=1 // pred_check
      _
    $region11: #{tpu_custom_call.1} parent=1 // pred_check_branch
      %18 = sbr.rel (0) target = $region13
    $region12: #{tpu_custom_call.1} parent=1 // pred_region
      _
    $region13: #{tpu_custom_call.1} parent=1 // pred_fallthru
      _
    // Predicated region
    $region14: #{tpu_custom_call.1} parent=1 // pred_check
      _
    $region15: #{tpu_custom_call.1} parent=1 // pred_check_branch
      %20 = sbr.rel (0) target = $region17
    $region16: #{tpu_custom_call.1} parent=1 // pred_region
      _
    $region17: #{tpu_custom_call.1} parent=1 // pred_fallthru
      _
    // Predicated region
    $region18: #{tpu_custom_call.1} parent=1 // pred_check
      _
    $region19: #{tpu_custom_call.1} parent=1 // pred_check_branch
      %22 = sbr.rel (0) target = $region21
    $region20: #{tpu_custom_call.1} parent=1 // pred_region
      _
    $region21: #{tpu_custom_call.1} parent=1 // pred_fallthru
      _
    // Predicated region
    $region22: #{tpu_custom_call.1} parent=1 // pred_check
      _
    $region23: #{tpu_custom_call.1} parent=1 // pred_check_branch
      %24 = sbr.rel (0) target = $region25
    $region24: #{tpu_custom_call.1} parent=1 // pred_region
      _
    $region25: #{tpu_custom_call.1} parent=1 // pred_fallthru
      _
    // Predicated region
    $region26: #{tpu_custom_call.1} parent=1 // pred_check
      _
    $region27: #{tpu_custom_call.1} parent=1 // pred_check_branch
      %26 = sbr.rel (0) target = $region29
    $region28: #{tpu_custom_call.1} parent=1 // pred_region
      _
    $region29: #{tpu_custom_call.1} parent=1 // pred_fallthru
      _
    %v28 = vld [vmem:[%s0] sm:$0xff]
    %v29 = vld [vmem:[%s0 + $0x8] sm:$0xff]
    %v30 = vld [vmem:[%s0 + $0x10] sm:$0xff]
    %v31 = vld [vmem:[%s0 + $0x18] sm:$0xff]
    %v32 = vld [vmem:[%s0 + $0x20] sm:$0xff]
    %v33 = vld [vmem:[%s0 + $0x28] sm:$0xff]
    %v34 = vld [vmem:[%s0 + $0x30] sm:$0xff]
    %v35 = vld [vmem:[%s0 + $0x38] sm:$0xff]
    %v36 = vld [vmem:[%s0 + $0x40] sm:$0xff]
    %v37 = vld [vmem:[%s0 + $0x48] sm:$0xff]
    %v38 = vld [vmem:[%s0 + $0x50] sm:$0xff]
    %v39 = vld [vmem:[%s0 + $0x58] sm:$0xff]
    %v40 = vld [vmem:[%s0 + $0x60] sm:$0xff]
    %v41 = vld [vmem:[%s0 + $0x68] sm:$0xff]
    %v42 = vld [vmem:[%s0 + $0x70] sm:$0xff]
    %v43 = vld [vmem:[%s0 + $0x78] sm:$0xff]
    %v44 = vld [vmem:[%s0 + $0x80] sm:$0xff]
    %v45 = vld [vmem:[%s0 + $0x88] sm:$0xff]
    %v46 = vld [vmem:[%s0 + $0x90] sm:$0xff]
    %v47 = vld [vmem:[%s0 + $0x98] sm:$0xff]
    %v48 = vld [vmem:[%s0 + $0xa0] sm:$0xff]
    %v49 = vld [vmem:[%s0 + $0xa8] sm:$0xff]
    %v50 = vld [vmem:[%s0 + $0xb0] sm:$0xff]
    %v51 = vld [vmem:[%s0 + $0xb8] sm:$0xff]
    %v52 = vld [vmem:[%s0 + $0xc0] sm:$0xff]
    %v53 = vld [vmem:[%s0 + $0xc8] sm:$0xff]
    %v54 = vld [vmem:[%s0 + $0xd0] sm:$0xff]
    %v55 = vld [vmem:[%s0 + $0xd8] sm:$0xff]
    %v56 = vld [vmem:[%s0 + $0xe0] sm:$0xff]
    %v57 = vld [vmem:[%s0 + $0xe8] sm:$0xff]
    %v58 = vld [vmem:[%s0 + $0xf0] sm:$0xff]
    %v59 = vld [vmem:[%s0 + $0xf8] sm:$0xff]
    %v60 = vpack.c.bf16 %v29, %v28
    %v61 = vpack.c.bf16 %v31, %v30
    %v62 = vpack.c.bf16 %v33, %v32
    %v63 = vpack.c.bf16 %v35, %v34
    %v64 = vpack.c.bf16 %v37, %v36
    %v65 = vpack.c.bf16 %v39, %v38
    %v66 = vpack.c.bf16 %v41, %v40
    %v67 = vpack.c.bf16 %v43, %v42
    %v68 = vpack.c.bf16 %v45, %v44
    %v69 = vpack.c.bf16 %v47, %v46
    %v70 = vpack.c.bf16 %v49, %v48
    %v71 = vpack.c.bf16 %v51, %v50
    %v72 = vpack.c.bf16 %v53, %v52
    %v73 = vpack.c.bf16 %v55, %v54
    %v74 = vpack.c.bf16 %v57, %v56
    %v75 = vpack.c.bf16 %v59, %v58
    %v76 = vld [vmem:[%s1] sm:$0xf]
    %v77 = vld [vmem:[%s1 + $0x4] sm:$0xf]
    %v78 = vld [vmem:[%s2] sm:$0x1]
    %v80 = vlaneseq
    %v81 = vshrl.u32 %v80, 7
    %v82 = vsub.s32 0, %v81
    %v83 = vrot.slane %v78, %v82
    %v87 = vunpack.c.l.b16 %v76
    %v88 = vunpack.c.l.b16 %v77
    %v89 = vpack.c.b16 %v88, %v87
    %vm91 = vcmask 130048
    %v93 = vsel %vm91, %v60, 0
    %v96 = vsel %vm91, %v61, 0
    %v99 = vsel %vm91, %v62, 0
    %v102 = vsel %vm91, %v63, 0
    %v105 = vsel %vm91, %v64, 0
    %v108 = vsel %vm91, %v65, 0
    %v111 = vsel %vm91, %v66, 0
    %v114 = vsel %vm91, %v67, 0
    %v117 = vsel %vm91, %v68, 0
    %v120 = vsel %vm91, %v69, 0
    %v123 = vsel %vm91, %v70, 0
    %v126 = vsel %vm91, %v71, 0
    %v129 = vsel %vm91, %v72, 0
    %v132 = vsel %vm91, %v73, 0
    %v135 = vsel %vm91, %v74, 0
    %v138 = vsel %vm91, %v75, 0
    %140 = vmatprep.subr.bf16.mxu0 0
    %141 = vmatpush1.bf16.msra.mxu0 %v89
    %142 = vmatprep.subr.bf16.mxu0 0
    %143 = vmatpush1.bf16.msra.mxu0 0
    %144 = vmatprep.subr.bf16.mxu0 0
    %145 = vmatpush1.bf16.msra.mxu0 0
    %146 = vmatprep.subr.bf16.mxu0 0
    %147 = vmatpush1.bf16.msra.mxu0 0
    %148 = vmatprep.subr.bf16.mxu0 0
    %149 = vmatpush1.bf16.msra.mxu0 0
    %150 = vmatprep.subr.bf16.mxu0 0
    %151 = vmatpush1.bf16.msra.mxu0 0
    %152 = vmatprep.subr.bf16.mxu0 0
    %153 = vmatpush1.bf16.msra.mxu0 0
    %154 = vmatprep.subr.bf16.mxu0 0
    %155 = vmatpush1.bf16.msra.mxu0 0
    %156 = vmatprep.subr.bf16.mxu0 0
    %157 = vmatpush1.bf16.msra.mxu0 0
    %158 = vmatprep.subr.bf16.mxu0 0
    %159 = vmatpush1.bf16.msra.mxu0 0
    %160 = vmatprep.subr.bf16.mxu0 0
    %161 = vmatpush1.bf16.msra.mxu0 0
    %162 = vmatprep.subr.bf16.mxu0 0
    %163 = vmatpush1.bf16.msra.mxu0 0
    %164 = vmatprep.subr.bf16.mxu0 0
    %165 = vmatpush1.bf16.msra.mxu0 0
    %166 = vmatprep.subr.bf16.mxu0 0
    %167 = vmatpush1.bf16.msra.mxu0 0
    %168 = vmatprep.subr.bf16.mxu0 0
    %169 = vmatpush1.bf16.msra.mxu0 0
    %170 = vmatprep.subr.bf16.mxu0 0
    %171 = vmatpush1.bf16.msra.mxu0 0
    %172 = vmatprep.mubr.bf16.mxu0 0
    %173 = vmatmul.mubr.bf16.gmra.mrb[0].mxu0 %v93
    %v174 = vpop.f32.mrb[0].mxu0
    %v175 = vadd.f32 %v83, %v174
    %v176 = vpop.f32.mrb[0].mxu0
    %v177 = vpop.f32.mrb[0].mxu0
    %v178 = vadd.f32 %v83, %v177
    %v179 = vpop.f32.mrb[0].mxu0
    %180 = vmatprep.mubr.bf16.mxu0 0
    %181 = vmatmul.mubr.bf16.gmra.mrb[0].mxu0 %v96
    %v182 = vpop.f32.mrb[0].mxu0
    %v183 = vadd.f32 %v83, %v182
    %v184 = vpop.f32.mrb[0].mxu0
    %v185 = vpop.f32.mrb[0].mxu0
    %v186 = vadd.f32 %v83, %v185
    %v187 = vpop.f32.mrb[0].mxu0
    %188 = vmatprep.mubr.bf16.mxu0 0
    %189 = vmatmul.mubr.bf16.gmra.mrb[0].mxu0 %v99
    %v190 = vpop.f32.mrb[0].mxu0
    %v191 = vadd.f32 %v83, %v190
    %v192 = vpop.f32.mrb[0].mxu0
    %v193 = vpop.f32.mrb[0].mxu0
    %v194 = vadd.f32 %v83, %v193
    %v195 = vpop.f32.mrb[0].mxu0
    %196 = vmatprep.mubr.bf16.mxu0 0
    %197 = vmatmul.mubr.bf16.gmra.mrb[0].mxu0 %v102
    %v198 = vpop.f32.mrb[0].mxu0
    %v199 = vadd.f32 %v83, %v198
    %v200 = vpop.f32.mrb[0].mxu0
    %v201 = vpop.f32.mrb[0].mxu0
    %v202 = vadd.f32 %v83, %v201
    %v203 = vpop.f32.mrb[0].mxu0
    %204 = vmatprep.mubr.bf16.mxu0 0
    %205 = vmatmul.mubr.bf16.gmra.mrb[0].mxu0 %v105
    %v206 = vpop.f32.mrb[0].mxu0
    %v207 = vadd.f32 %v83, %v206
    %v208 = vpop.f32.mrb[0].mxu0
    %v209 = vpop.f32.mrb[0].mxu0
    %v210 = vadd.f32 %v83, %v209
    %v211 = vpop.f32.mrb[0].mxu0
    %212 = vmatprep.mubr.bf16.mxu0 0
    %213 = vmatmul.mubr.bf16.gmra.mrb[0].mxu0 %v108
    %v214 = vpop.f32.mrb[0].mxu0
    %v215 = vadd.f32 %v83, %v214
    %v216 = vpop.f32.mrb[0].mxu0
    %v217 = vpop.f32.mrb[0].mxu0
    %v218 = vadd.f32 %v83, %v217
    %v219 = vpop.f32.mrb[0].mxu0
    %220 = vmatprep.mubr.bf16.mxu0 0
    %221 = vmatmul.mubr.bf16.gmra.mrb[0].mxu0 %v111
    %v222 = vpop.f32.mrb[0].mxu0
    %v223 = vadd.f32 %v83, %v222
    %v224 = vpop.f32.mrb[0].mxu0
    %v225 = vpop.f32.mrb[0].mxu0
    %v226 = vadd.f32 %v83, %v225
    %v227 = vpop.f32.mrb[0].mxu0
    %228 = vmatprep.mubr.bf16.mxu0 0
    %229 = vmatmul.mubr.bf16.gmra.mrb[0].mxu0 %v114
    %v230 = vpop.f32.mrb[0].mxu0
    %v231 = vadd.f32 %v83, %v230
    %v232 = vpop.f32.mrb[0].mxu0
    %v233 = vpop.f32.mrb[0].mxu0
    %v234 = vadd.f32 %v83, %v233
    %v235 = vpop.f32.mrb[0].mxu0
    %236 = vmatprep.mubr.bf16.mxu0 0
    %237 = vmatmul.mubr.bf16.gmra.mrb[0].mxu0 %v117
    %v238 = vpop.f32.mrb[0].mxu0
    %v239 = vadd.f32 %v83, %v238
    %v240 = vpop.f32.mrb[0].mxu0
    %v241 = vpop.f32.mrb[0].mxu0
    %v242 = vadd.f32 %v83, %v241
    %v243 = vpop.f32.mrb[0].mxu0
    %244 = vmatprep.mubr.bf16.mxu0 0
    %245 = vmatmul.mubr.bf16.gmra.mrb[0].mxu0 %v120
    %v246 = vpop.f32.mrb[0].mxu0
    %v247 = vadd.f32 %v83, %v246
    %v248 = vpop.f32.mrb[0].mxu0
    %v249 = vpop.f32.mrb[0].mxu0
    %v250 = vadd.f32 %v83, %v249
    %v251 = vpop.f32.mrb[0].mxu0
    %252 = vmatprep.mubr.bf16.mxu0 0
    %253 = vmatmul.mubr.bf16.gmra.mrb[0].mxu0 %v123
    %v254 = vpop.f32.mrb[0].mxu0
    %v255 = vadd.f32 %v83, %v254
    %v256 = vpop.f32.mrb[0].mxu0
    %v257 = vpop.f32.mrb[0].mxu0
    %v258 = vadd.f32 %v83, %v257
    %v259 = vpop.f32.mrb[0].mxu0
    %260 = vmatprep.mubr.bf16.mxu0 0
    %261 = vmatmul.mubr.bf16.gmra.mrb[0].mxu0 %v126
    %v262 = vpop.f32.mrb[0].mxu0
    %v263 = vadd.f32 %v83, %v262
    %v264 = vpop.f32.mrb[0].mxu0
    %v265 = vpop.f32.mrb[0].mxu0
    %v266 = vadd.f32 %v83, %v265
    %v267 = vpop.f32.mrb[0].mxu0
    %268 = vmatprep.mubr.bf16.mxu0 0
    %269 = vmatmul.mubr.bf16.gmra.mrb[0].mxu0 %v129
    %v270 = vpop.f32.mrb[0].mxu0
    %v271 = vadd.f32 %v83, %v270
    %v272 = vpop.f32.mrb[0].mxu0
    %v273 = vpop.f32.mrb[0].mxu0
    %v274 = vadd.f32 %v83, %v273
    %v275 = vpop.f32.mrb[0].mxu0
    %276 = vmatprep.mubr.bf16.mxu0 0
    %277 = vmatmul.mubr.bf16.gmra.mrb[0].mxu0 %v132
    %v278 = vpop.f32.mrb[0].mxu0
    %v279 = vadd.f32 %v83, %v278
    %v280 = vpop.f32.mrb[0].mxu0
    %v281 = vpop.f32.mrb[0].mxu0
    %v282 = vadd.f32 %v83, %v281
    %v283 = vpop.f32.mrb[0].mxu0
    %284 = vmatprep.mubr.bf16.mxu0 0
    %285 = vmatmul.mubr.bf16.gmra.mrb[0].mxu0 %v135
    %v286 = vpop.f32.mrb[0].mxu0
    %v287 = vadd.f32 %v83, %v286
    %v288 = vpop.f32.mrb[0].mxu0
    %v289 = vpop.f32.mrb[0].mxu0
    %v290 = vadd.f32 %v83, %v289
    %v291 = vpop.f32.mrb[0].mxu0
    %292 = vmatprep.mubr.bf16.mxu0 0
    %293 = vmatmul.mubr.bf16.gmra.mrb[0].mxu0 %v138
    %v294 = vpop.f32.mrb[0].mxu0
    %v295 = vadd.f32 %v83, %v294
    %v296 = vpop.f32.mrb[0].mxu0
    %v297 = vpop.f32.mrb[0].mxu0
    %v298 = vadd.f32 %v83, %v297
    %v299 = vpop.f32.mrb[0].mxu0
    %300 = vdwg.mxu0
    %v301 = vmul.f32 %v175, 0.01
    %v302 = vmul.f32 %v178, 0.01
    %v303 = vmul.f32 %v183, 0.01
    %v304 = vmul.f32 %v186, 0.01
    %v305 = vmul.f32 %v191, 0.01
    %v306 = vmul.f32 %v194, 0.01
    %v307 = vmul.f32 %v199, 0.01
    %v308 = vmul.f32 %v202, 0.01
    %v309 = vmul.f32 %v207, 0.01
    %v310 = vmul.f32 %v210, 0.01
    %v311 = vmul.f32 %v215, 0.01
    %v312 = vmul.f32 %v218, 0.01
    %v313 = vmul.f32 %v223, 0.01
    %v314 = vmul.f32 %v226, 0.01
    %v315 = vmul.f32 %v231, 0.01
    %v316 = vmul.f32 %v234, 0.01
    %v317 = vmul.f32 %v239, 0.01
    %v318 = vmul.f32 %v242, 0.01
    %v319 = vmul.f32 %v247, 0.01
    %v320 = vmul.f32 %v250, 0.01
    %v321 = vmul.f32 %v255, 0.01
    %v322 = vmul.f32 %v258, 0.01
    %v323 = vmul.f32 %v263, 0.01
    %v324 = vmul.f32 %v266, 0.01
    %v325 = vmul.f32 %v271, 0.01
    %v326 = vmul.f32 %v274, 0.01
    %v327 = vmul.f32 %v279, 0.01
    %v328 = vmul.f32 %v282, 0.01
    %v329 = vmul.f32 %v287, 0.01
    %v330 = vmul.f32 %v290, 0.01
    %v331 = vmul.f32 %v295, 0.01
    %v332 = vmul.f32 %v298, 0.01
    %v333 = vmax.f32 %v175, %v301
    %v334 = vmax.f32 %v178, %v302
    %v335 = vmax.f32 %v183, %v303
    %v336 = vmax.f32 %v186, %v304
    %v337 = vmax.f32 %v191, %v305
    %v338 = vmax.f32 %v194, %v306
    %v339 = vmax.f32 %v199, %v307
    %v340 = vmax.f32 %v202, %v308
    %v341 = vmax.f32 %v207, %v309
    %v342 = vmax.f32 %v210, %v310
    %v343 = vmax.f32 %v215, %v311
    %v344 = vmax.f32 %v218, %v312
    %v345 = vmax.f32 %v223, %v313
    %v346 = vmax.f32 %v226, %v314
    %v347 = vmax.f32 %v231, %v315
    %v348 = vmax.f32 %v234, %v316
    %v349 = vmax.f32 %v239, %v317
    %v350 = vmax.f32 %v242, %v318
    %v351 = vmax.f32 %v247, %v319
    %v352 = vmax.f32 %v250, %v320
    %v353 = vmax.f32 %v255, %v321
    %v354 = vmax.f32 %v258, %v322
    %v355 = vmax.f32 %v263, %v323
    %v356 = vmax.f32 %v266, %v324
    %v357 = vmax.f32 %v271, %v325
    %v358 = vmax.f32 %v274, %v326
    %v359 = vmax.f32 %v279, %v327
    %v360 = vmax.f32 %v282, %v328
    %v361 = vmax.f32 %v287, %v329
    %v362 = vmax.f32 %v290, %v330
    %v363 = vmax.f32 %v295, %v331
    %v364 = vmax.f32 %v298, %v332
    %v365 = vpack.c.bf16 %v334, %v333
    %v366 = vpack.c.bf16 %v336, %v335
    %v367 = vpack.c.bf16 %v338, %v337
    %v368 = vpack.c.bf16 %v340, %v339
    %v369 = vpack.c.bf16 %v342, %v341
    %v370 = vpack.c.bf16 %v344, %v343
    %v371 = vpack.c.bf16 %v346, %v345
    %v372 = vpack.c.bf16 %v348, %v347
    %v373 = vpack.c.bf16 %v350, %v349
    %v374 = vpack.c.bf16 %v352, %v351
    %v375 = vpack.c.bf16 %v354, %v353
    %v376 = vpack.c.bf16 %v356, %v355
    %v377 = vpack.c.bf16 %v358, %v357
    %v378 = vpack.c.bf16 %v360, %v359
    %v379 = vpack.c.bf16 %v362, %v361
    %v380 = vpack.c.bf16 %v364, %v363
    %v381 = vld [vmem:[%s3] sm:$0xf]
    %v382 = vld [vmem:[%s3 + $0x4] sm:$0xf]
    %v383 = vld [vmem:[%s3 + $0x8] sm:$0xf]
    %v384 = vld [vmem:[%s3 + $0xc] sm:$0xf]
    %v385 = vld [vmem:[%s3 + $0x10] sm:$0xf]
    %v386 = vld [vmem:[%s3 + $0x14] sm:$0xf]
    %v387 = vld [vmem:[%s3 + $0x18] sm:$0xf]
    %v388 = vld [vmem:[%s3 + $0x1c] sm:$0xf]
    %v389 = vld [vmem:[%s3 + $0x20] sm:$0xf]
    %v390 = vld [vmem:[%s3 + $0x24] sm:$0xf]
    %v391 = vld [vmem:[%s3 + $0x28] sm:$0xf]
    %v392 = vld [vmem:[%s3 + $0x2c] sm:$0xf]
    %v393 = vld [vmem:[%s3 + $0x30] sm:$0xf]
    %v394 = vld [vmem:[%s3 + $0x34] sm:$0xf]
    %v395 = vld [vmem:[%s3 + $0x38] sm:$0xf]
    %v396 = vld [vmem:[%s3 + $0x3c] sm:$0xf]
    %v397 = vld [vmem:[%s4] sm:$0x1]
    %v399 = vlaneseq
    %v400 = vshrl.u32 %v399, 7
    %v401 = vsub.s32 0, %v400
    %v402 = vrot.slane %v397, %v401
    %v420 = vunpack.c.l.b16 %v381
    %v421 = vunpack.c.l.b16 %v382
    %v422 = vunpack.c.l.b16 %v383
    %v423 = vunpack.c.l.b16 %v384
    %v424 = vunpack.c.l.b16 %v385
    %v425 = vunpack.c.l.b16 %v386
    %v426 = vunpack.c.l.b16 %v387
    %v427 = vunpack.c.l.b16 %v388
    %v428 = vunpack.c.l.b16 %v389
    %v429 = vunpack.c.l.b16 %v390
    %v430 = vunpack.c.l.b16 %v391
    %v431 = vunpack.c.l.b16 %v392
    %v432 = vunpack.c.l.b16 %v393
    %v433 = vunpack.c.l.b16 %v394
    %v434 = vunpack.c.l.b16 %v395
    %v435 = vunpack.c.l.b16 %v396
    %v436 = vpack.c.b16 %v421, %v420
    %v437 = vpack.c.b16 %v423, %v422
    %v438 = vpack.c.b16 %v425, %v424
    %v439 = vpack.c.b16 %v427, %v426
    %v440 = vpack.c.b16 %v429, %v428
    %v441 = vpack.c.b16 %v431, %v430
    %v442 = vpack.c.b16 %v433, %v432
    %v443 = vpack.c.b16 %v435, %v434
    %452 = vmatprep.subr.bf16.mxu0 0
    %453 = vmatpush1.bf16.msra.mxu0 %v436
    %454 = vmatprep.subr.bf16.mxu0 0
    %455 = vmatpush1.bf16.msra.mxu0 %v437
    %456 = vmatprep.subr.bf16.mxu0 0
    %457 = vmatpush1.bf16.msra.mxu0 %v438
    %458 = vmatprep.subr.bf16.mxu0 0
    %459 = vmatpush1.bf16.msra.mxu0 %v439
    %460 = vmatprep.subr.bf16.mxu0 0
    %461 = vmatpush1.bf16.msra.mxu0 %v440
    %462 = vmatprep.subr.bf16.mxu0 0
    %463 = vmatpush1.bf16.msra.mxu0 %v441
    %464 = vmatprep.subr.bf16.mxu0 0
    %465 = vmatpush1.bf16.msra.mxu0 %v442
    %466 = vmatprep.subr.bf16.mxu0 0
    %467 = vmatpush1.bf16.msra.mxu0 %v443
    %468 = vmatprep.subr.bf16.mxu0 0
    %469 = vmatpush1.bf16.msra.mxu0 0
    %470 = vmatprep.subr.bf16.mxu0 0
    %471 = vmatpush1.bf16.msra.mxu0 0
    %472 = vmatprep.subr.bf16.mxu0 0
    %473 = vmatpush1.bf16.msra.mxu0 0
    %474 = vmatprep.subr.bf16.mxu0 0
    %475 = vmatpush1.bf16.msra.mxu0 0
    %476 = vmatprep.subr.bf16.mxu0 0
    %477 = vmatpush1.bf16.msra.mxu0 0
    %478 = vmatprep.subr.bf16.mxu0 0
    %479 = vmatpush1.bf16.msra.mxu0 0
    %480 = vmatprep.subr.bf16.mxu0 0
    %481 = vmatpush1.bf16.msra.mxu0 0
    %482 = vmatprep.subr.bf16.mxu0 0
    %483 = vmatpush1.bf16.msra.mxu0 0
    %484 = vmatprep.mubr.bf16.mxu0 0
    %485 = vmatmul.mubr.bf16.gmra.mrb[0].mxu0 %v365
    %v486 = vpop.f32.mrb[0].mxu0
    %v487 = vadd.f32 %v402, %v486
    %v488 = vpop.f32.mrb[0].mxu0
    %v489 = vpop.f32.mrb[0].mxu0
    %v490 = vadd.f32 %v402, %v489
    %v491 = vpop.f32.mrb[0].mxu0
    %492 = vmatprep.mubr.bf16.mxu0 0
    %493 = vmatmul.mubr.bf16.gmra.mrb[0].mxu0 %v366
    %v494 = vpop.f32.mrb[0].mxu0
    %v495 = vadd.f32 %v402, %v494
    %v496 = vpop.f32.mrb[0].mxu0
    %v497 = vpop.f32.mrb[0].mxu0
    %v498 = vadd.f32 %v402, %v497
    %v499 = vpop.f32.mrb[0].mxu0
    %500 = vmatprep.mubr.bf16.mxu0 0
    %501 = vmatmul.mubr.bf16.gmra.mrb[0].mxu0 %v367
    %v502 = vpop.f32.mrb[0].mxu0
    %v503 = vadd.f32 %v402, %v502
    %v504 = vpop.f32.mrb[0].mxu0
    %v505 = vpop.f32.mrb[0].mxu0
    %v506 = vadd.f32 %v402, %v505
    %v507 = vpop.f32.mrb[0].mxu0
    %508 = vmatprep.mubr.bf16.mxu0 0
    %509 = vmatmul.mubr.bf16.gmra.mrb[0].mxu0 %v368
    %v510 = vpop.f32.mrb[0].mxu0
    %v511 = vadd.f32 %v402, %v510
    %v512 = vpop.f32.mrb[0].mxu0
    %v513 = vpop.f32.mrb[0].mxu0
    %v514 = vadd.f32 %v402, %v513
    %v515 = vpop.f32.mrb[0].mxu0
    %516 = vmatprep.mubr.bf16.mxu0 0
    %517 = vmatmul.mubr.bf16.gmra.mrb[0].mxu0 %v369
    %v518 = vpop.f32.mrb[0].mxu0
    %v519 = vadd.f32 %v402, %v518
    %v520 = vpop.f32.mrb[0].mxu0
    %v521 = vpop.f32.mrb[0].mxu0
    %v522 = vadd.f32 %v402, %v521
    %v523 = vpop.f32.mrb[0].mxu0
    %524 = vmatprep.mubr.bf16.mxu0 0
    %525 = vmatmul.mubr.bf16.gmra.mrb[0].mxu0 %v370
    %v526 = vpop.f32.mrb[0].mxu0
    %v527 = vadd.f32 %v402, %v526
    %v528 = vpop.f32.mrb[0].mxu0
    %v529 = vpop.f32.mrb[0].mxu0
    %v530 = vadd.f32 %v402, %v529
    %v531 = vpop.f32.mrb[0].mxu0
    %532 = vmatprep.mubr.bf16.mxu0 0
    %533 = vmatmul.mubr.bf16.gmra.mrb[0].mxu0 %v371
    %v534 = vpop.f32.mrb[0].mxu0
    %v535 = vadd.f32 %v402, %v534
    %v536 = vpop.f32.mrb[0].mxu0
    %v537 = vpop.f32.mrb[0].mxu0
    %v538 = vadd.f32 %v402, %v537
    %v539 = vpop.f32.mrb[0].mxu0
    %540 = vmatprep.mubr.bf16.mxu0 0
    %541 = vmatmul.mubr.bf16.gmra.mrb[0].mxu0 %v372
    %v542 = vpop.f32.mrb[0].mxu0
    %v543 = vadd.f32 %v402, %v542
    %v544 = vpop.f32.mrb[0].mxu0
    %v545 = vpop.f32.mrb[0].mxu0
    %v546 = vadd.f32 %v402, %v545
    %v547 = vpop.f32.mrb[0].mxu0
    %548 = vmatprep.mubr.bf16.mxu0 0
    %549 = vmatmul.mubr.bf16.gmra.mrb[0].mxu0 %v373
    %v550 = vpop.f32.mrb[0].mxu0
    %v551 = vadd.f32 %v402, %v550
    %v552 = vpop.f32.mrb[0].mxu0
    %v553 = vpop.f32.mrb[0].mxu0
    %v554 = vadd.f32 %v402, %v553
    %v555 = vpop.f32.mrb[0].mxu0
    %556 = vmatprep.mubr.bf16.mxu0 0
    %557 = vmatmul.mubr.bf16.gmra.mrb[0].mxu0 %v374
    %v558 = vpop.f32.mrb[0].mxu0
    %v559 = vadd.f32 %v402, %v558
    %v560 = vpop.f32.mrb[0].mxu0
    %v561 = vpop.f32.mrb[0].mxu0
    %v562 = vadd.f32 %v402, %v561
    %v563 = vpop.f32.mrb[0].mxu0
    %564 = vmatprep.mubr.bf16.mxu0 0
    %565 = vmatmul.mubr.bf16.gmra.mrb[0].mxu0 %v375
    %v566 = vpop.f32.mrb[0].mxu0
    %v567 = vadd.f32 %v402, %v566
    %v568 = vpop.f32.mrb[0].mxu0
    %v569 = vpop.f32.mrb[0].mxu0
    %v570 = vadd.f32 %v402, %v569
    %v571 = vpop.f32.mrb[0].mxu0
    %572 = vmatprep.mubr.bf16.mxu0 0
    %573 = vmatmul.mubr.bf16.gmra.mrb[0].mxu0 %v376
    %v574 = vpop.f32.mrb[0].mxu0
    %v575 = vadd.f32 %v402, %v574
    %v576 = vpop.f32.mrb[0].mxu0
    %v577 = vpop.f32.mrb[0].mxu0
    %v578 = vadd.f32 %v402, %v577
    %v579 = vpop.f32.mrb[0].mxu0
    %580 = vmatprep.mubr.bf16.mxu0 0
    %581 = vmatmul.mubr.bf16.gmra.mrb[0].mxu0 %v377
    %v582 = vpop.f32.mrb[0].mxu0
    %v583 = vadd.f32 %v402, %v582
    %v584 = vpop.f32.mrb[0].mxu0
    %v585 = vpop.f32.mrb[0].mxu0
    %v586 = vadd.f32 %v402, %v585
    %v587 = vpop.f32.mrb[0].mxu0
    %588 = vmatprep.mubr.bf16.mxu0 0
    %589 = vmatmul.mubr.bf16.gmra.mrb[0].mxu0 %v378
    %v590 = vpop.f32.mrb[0].mxu0
    %v591 = vadd.f32 %v402, %v590
    %v592 = vpop.f32.mrb[0].mxu0
    %v593 = vpop.f32.mrb[0].mxu0
    %v594 = vadd.f32 %v402, %v593
    %v595 = vpop.f32.mrb[0].mxu0
    %596 = vmatprep.mubr.bf16.mxu0 0
    %597 = vmatmul.mubr.bf16.gmra.mrb[0].mxu0 %v379
    %v598 = vpop.f32.mrb[0].mxu0
    %v599 = vadd.f32 %v402, %v598
    %v600 = vpop.f32.mrb[0].mxu0
    %v601 = vpop.f32.mrb[0].mxu0
    %v602 = vadd.f32 %v402, %v601
    %v603 = vpop.f32.mrb[0].mxu0
    %604 = vmatprep.mubr.bf16.mxu0 0
    %605 = vmatmul.mubr.bf16.gmra.mrb[0].mxu0 %v380
    %v606 = vpop.f32.mrb[0].mxu0
    %v607 = vadd.f32 %v402, %v606
    %v608 = vpop.f32.mrb[0].mxu0
    %v609 = vpop.f32.mrb[0].mxu0
    %v610 = vadd.f32 %v402, %v609
    %v611 = vpop.f32.mrb[0].mxu0
    %612 = vdwg.mxu0
    %v613 = vmul.f32 %v487, 0.01
    %v614 = vmul.f32 %v490, 0.01
    %v615 = vmul.f32 %v495, 0.01
    %v616 = vmul.f32 %v498, 0.01
    %v617 = vmul.f32 %v503, 0.01
    %v618 = vmul.f32 %v506, 0.01
    %v619 = vmul.f32 %v511, 0.01
    %v620 = vmul.f32 %v514, 0.01
    %v621 = vmul.f32 %v519, 0.01
    %v622 = vmul.f32 %v522, 0.01
    %v623 = vmul.f32 %v527, 0.01
    %v624 = vmul.f32 %v530, 0.01
    %v625 = vmul.f32 %v535, 0.01
    %v626 = vmul.f32 %v538, 0.01
    %v627 = vmul.f32 %v543, 0.01
    %v628 = vmul.f32 %v546, 0.01
    %v629 = vmul.f32 %v551, 0.01
    %v630 = vmul.f32 %v554, 0.01
    %v631 = vmul.f32 %v559, 0.01
    %v632 = vmul.f32 %v562, 0.01
    %v633 = vmul.f32 %v567, 0.01
    %v634 = vmul.f32 %v570, 0.01
    %v635 = vmul.f32 %v575, 0.01
    %v636 = vmul.f32 %v578, 0.01
    %v637 = vmul.f32 %v583, 0.01
    %v638 = vmul.f32 %v586, 0.01
    %v639 = vmul.f32 %v591, 0.01
    %v640 = vmul.f32 %v594, 0.01
    %v641 = vmul.f32 %v599, 0.01
    %v642 = vmul.f32 %v602, 0.01
    %v643 = vmul.f32 %v607, 0.01
    %v644 = vmul.f32 %v610, 0.01
    %v645 = vmax.f32 %v487, %v613
    %v646 = vmax.f32 %v490, %v614
    %v647 = vmax.f32 %v495, %v615
    %v648 = vmax.f32 %v498, %v616
    %v649 = vmax.f32 %v503, %v617
    %v650 = vmax.f32 %v506, %v618
    %v651 = vmax.f32 %v511, %v619
    %v652 = vmax.f32 %v514, %v620
    %v653 = vmax.f32 %v519, %v621
    %v654 = vmax.f32 %v522, %v622
    %v655 = vmax.f32 %v527, %v623
    %v656 = vmax.f32 %v530, %v624
    %v657 = vmax.f32 %v535, %v625
    %v658 = vmax.f32 %v538, %v626
    %v659 = vmax.f32 %v543, %v627
    %v660 = vmax.f32 %v546, %v628
    %v661 = vmax.f32 %v551, %v629
    %v662 = vmax.f32 %v554, %v630
    %v663 = vmax.f32 %v559, %v631
    %v664 = vmax.f32 %v562, %v632
    %v665 = vmax.f32 %v567, %v633
    %v666 = vmax.f32 %v570, %v634
    %v667 = vmax.f32 %v575, %v635
    %v668 = vmax.f32 %v578, %v636
    %v669 = vmax.f32 %v583, %v637
    %v670 = vmax.f32 %v586, %v638
    %v671 = vmax.f32 %v591, %v639
    %v672 = vmax.f32 %v594, %v640
    %v673 = vmax.f32 %v599, %v641
    %v674 = vmax.f32 %v602, %v642
    %v675 = vmax.f32 %v607, %v643
    %v676 = vmax.f32 %v610, %v644
    %v677 = vpack.c.bf16 %v646, %v645
    %v678 = vpack.c.bf16 %v648, %v647
    %v679 = vpack.c.bf16 %v650, %v649
    %v680 = vpack.c.bf16 %v652, %v651
    %v681 = vpack.c.bf16 %v654, %v653
    %v682 = vpack.c.bf16 %v656, %v655
    %v683 = vpack.c.bf16 %v658, %v657
    %v684 = vpack.c.bf16 %v660, %v659
    %v685 = vpack.c.bf16 %v662, %v661
    %v686 = vpack.c.bf16 %v664, %v663
    %v687 = vpack.c.bf16 %v666, %v665
    %v688 = vpack.c.bf16 %v668, %v667
    %v689 = vpack.c.bf16 %v670, %v669
    %v690 = vpack.c.bf16 %v672, %v671
    %v691 = vpack.c.bf16 %v674, %v673
    %v692 = vpack.c.bf16 %v676, %v675
    %v693 = vld [vmem:[%s5] sm:$0xf]
    %v694 = vld [vmem:[%s5 + $0x4] sm:$0xf]
    %v695 = vld [vmem:[%s5 + $0x8] sm:$0xf]
    %v696 = vld [vmem:[%s5 + $0xc] sm:$0xf]
    %v697 = vld [vmem:[%s5 + $0x10] sm:$0xf]
    %v698 = vld [vmem:[%s5 + $0x14] sm:$0xf]
    %v699 = vld [vmem:[%s5 + $0x18] sm:$0xf]
    %v700 = vld [vmem:[%s5 + $0x1c] sm:$0xf]
    %v701 = vld [vmem:[%s5 + $0x20] sm:$0xf]
    %v702 = vld [vmem:[%s5 + $0x24] sm:$0xf]
    %v703 = vld [vmem:[%s5 + $0x28] sm:$0xf]
    %v704 = vld [vmem:[%s5 + $0x2c] sm:$0xf]
    %v705 = vld [vmem:[%s5 + $0x30] sm:$0xf]
    %v706 = vld [vmem:[%s5 + $0x34] sm:$0xf]
    %v707 = vld [vmem:[%s5 + $0x38] sm:$0xf]
    %v708 = vld [vmem:[%s5 + $0x3c] sm:$0xf]
    %v709 = vld [vmem:[%s6] sm:$0x1]
    %v711 = vlaneseq
    %v712 = vshrl.u32 %v711, 7
    %v713 = vsub.s32 0, %v712
    %v714 = vrot.slane %v709, %v713
    %v732 = vunpack.c.l.b16 %v693
    %v733 = vunpack.c.l.b16 %v694
    %v734 = vunpack.c.l.b16 %v695
    %v735 = vunpack.c.l.b16 %v696
    %v736 = vunpack.c.l.b16 %v697
    %v737 = vunpack.c.l.b16 %v698
    %v738 = vunpack.c.l.b16 %v699
    %v739 = vunpack.c.l.b16 %v700
    %v740 = vunpack.c.l.b16 %v701
    %v741 = vunpack.c.l.b16 %v702
    %v742 = vunpack.c.l.b16 %v703
    %v743 = vunpack.c.l.b16 %v704
    %v744 = vunpack.c.l.b16 %v705
    %v745 = vunpack.c.l.b16 %v706
    %v746 = vunpack.c.l.b16 %v707
    %v747 = vunpack.c.l.b16 %v708
    %v748 = vpack.c.b16 %v733, %v732
    %v749 = vpack.c.b16 %v735, %v734
    %v750 = vpack.c.b16 %v737, %v736
    %v751 = vpack.c.b16 %v739, %v738
    %v752 = vpack.c.b16 %v741, %v740
    %v753 = vpack.c.b16 %v743, %v742
    %v754 = vpack.c.b16 %v745, %v744
    %v755 = vpack.c.b16 %v747, %v746
    %764 = vmatprep.subr.bf16.mxu0 0
    %765 = vmatpush1.bf16.msra.mxu0 %v748
    %766 = vmatprep.subr.bf16.mxu0 0
    %767 = vmatpush1.bf16.msra.mxu0 %v749
    %768 = vmatprep.subr.bf16.mxu0 0
    %769 = vmatpush1.bf16.msra.mxu0 %v750
    %770 = vmatprep.subr.bf16.mxu0 0
    %771 = vmatpush1.bf16.msra.mxu0 %v751
    %772 = vmatprep.subr.bf16.mxu0 0
    %773 = vmatpush1.bf16.msra.mxu0 %v752
    %774 = vmatprep.subr.bf16.mxu0 0
    %775 = vmatpush1.bf16.msra.mxu0 %v753
    %776 = vmatprep.subr.bf16.mxu0 0
    %777 = vmatpush1.bf16.msra.mxu0 %v754
    %778 = vmatprep.subr.bf16.mxu0 0
    %779 = vmatpush1.bf16.msra.mxu0 %v755
    %780 = vmatprep.subr.bf16.mxu0 0
    %781 = vmatpush1.bf16.msra.mxu0 0
    %782 = vmatprep.subr.bf16.mxu0 0
    %783 = vmatpush1.bf16.msra.mxu0 0
    %784 = vmatprep.subr.bf16.mxu0 0
    %785 = vmatpush1.bf16.msra.mxu0 0
    %786 = vmatprep.subr.bf16.mxu0 0
    %787 = vmatpush1.bf16.msra.mxu0 0
    %788 = vmatprep.subr.bf16.mxu0 0
    %789 = vmatpush1.bf16.msra.mxu0 0
    %790 = vmatprep.subr.bf16.mxu0 0
    %791 = vmatpush1.bf16.msra.mxu0 0
    %792 = vmatprep.subr.bf16.mxu0 0
    %793 = vmatpush1.bf16.msra.mxu0 0
    %794 = vmatprep.subr.bf16.mxu0 0
    %795 = vmatpush1.bf16.msra.mxu0 0
    %796 = vmatprep.mubr.bf16.mxu0 0
    %797 = vmatmul.mubr.bf16.gmra.mrb[0].mxu0 %v677
    %v798 = vpop.f32.mrb[0].mxu0
    %v799 = vadd.f32 %v714, %v798
    %v800 = vpop.f32.mrb[0].mxu0
    %v801 = vpop.f32.mrb[0].mxu0
    %v802 = vadd.f32 %v714, %v801
    %v803 = vpop.f32.mrb[0].mxu0
    %804 = vmatprep.mubr.bf16.mxu0 0
    %805 = vmatmul.mubr.bf16.gmra.mrb[0].mxu0 %v678
    %v806 = vpop.f32.mrb[0].mxu0
    %v807 = vadd.f32 %v714, %v806
    %v808 = vpop.f32.mrb[0].mxu0
    %v809 = vpop.f32.mrb[0].mxu0
    %v810 = vadd.f32 %v714, %v809
    %v811 = vpop.f32.mrb[0].mxu0
    %812 = vmatprep.mubr.bf16.mxu0 0
    %813 = vmatmul.mubr.bf16.gmra.mrb[0].mxu0 %v679
    %v814 = vpop.f32.mrb[0].mxu0
    %v815 = vadd.f32 %v714, %v814
    %v816 = vpop.f32.mrb[0].mxu0
    %v817 = vpop.f32.mrb[0].mxu0
    %v818 = vadd.f32 %v714, %v817
    %v819 = vpop.f32.mrb[0].mxu0
    %820 = vmatprep.mubr.bf16.mxu0 0
    %821 = vmatmul.mubr.bf16.gmra.mrb[0].mxu0 %v680
    %v822 = vpop.f32.mrb[0].mxu0
    %v823 = vadd.f32 %v714, %v822
    %v824 = vpop.f32.mrb[0].mxu0
    %v825 = vpop.f32.mrb[0].mxu0
    %v826 = vadd.f32 %v714, %v825
    %v827 = vpop.f32.mrb[0].mxu0
    %828 = vmatprep.mubr.bf16.mxu0 0
    %829 = vmatmul.mubr.bf16.gmra.mrb[0].mxu0 %v681
    %v830 = vpop.f32.mrb[0].mxu0
    %v831 = vadd.f32 %v714, %v830
    %v832 = vpop.f32.mrb[0].mxu0
    %v833 = vpop.f32.mrb[0].mxu0
    %v834 = vadd.f32 %v714, %v833
    %v835 = vpop.f32.mrb[0].mxu0
    %836 = vmatprep.mubr.bf16.mxu0 0
    %837 = vmatmul.mubr.bf16.gmra.mrb[0].mxu0 %v682
    %v838 = vpop.f32.mrb[0].mxu0
    %v839 = vadd.f32 %v714, %v838
    %v840 = vpop.f32.mrb[0].mxu0
    %v841 = vpop.f32.mrb[0].mxu0
    %v842 = vadd.f32 %v714, %v841
    %v843 = vpop.f32.mrb[0].mxu0
    %844 = vmatprep.mubr.bf16.mxu0 0
    %845 = vmatmul.mubr.bf16.gmra.mrb[0].mxu0 %v683
    %v846 = vpop.f32.mrb[0].mxu0
    %v847 = vadd.f32 %v714, %v846
    %v848 = vpop.f32.mrb[0].mxu0
    %v849 = vpop.f32.mrb[0].mxu0
    %v850 = vadd.f32 %v714, %v849
    %v851 = vpop.f32.mrb[0].mxu0
    %852 = vmatprep.mubr.bf16.mxu0 0
    %853 = vmatmul.mubr.bf16.gmra.mrb[0].mxu0 %v684
    %v854 = vpop.f32.mrb[0].mxu0
    %v855 = vadd.f32 %v714, %v854
    %v856 = vpop.f32.mrb[0].mxu0
    %v857 = vpop.f32.mrb[0].mxu0
    %v858 = vadd.f32 %v714, %v857
    %v859 = vpop.f32.mrb[0].mxu0
    %860 = vmatprep.mubr.bf16.mxu0 0
    %861 = vmatmul.mubr.bf16.gmra.mrb[0].mxu0 %v685
    %v862 = vpop.f32.mrb[0].mxu0
    %v863 = vadd.f32 %v714, %v862
    %v864 = vpop.f32.mrb[0].mxu0
    %v865 = vpop.f32.mrb[0].mxu0
    %v866 = vadd.f32 %v714, %v865
    %v867 = vpop.f32.mrb[0].mxu0
    %868 = vmatprep.mubr.bf16.mxu0 0
    %869 = vmatmul.mubr.bf16.gmra.mrb[0].mxu0 %v686
    %v870 = vpop.f32.mrb[0].mxu0
    %v871 = vadd.f32 %v714, %v870
    %v872 = vpop.f32.mrb[0].mxu0
    %v873 = vpop.f32.mrb[0].mxu0
    %v874 = vadd.f32 %v714, %v873
    %v875 = vpop.f32.mrb[0].mxu0
    %876 = vmatprep.mubr.bf16.mxu0 0
    %877 = vmatmul.mubr.bf16.gmra.mrb[0].mxu0 %v687
    %v878 = vpop.f32.mrb[0].mxu0
    %v879 = vadd.f32 %v714, %v878
    %v880 = vpop.f32.mrb[0].mxu0
    %v881 = vpop.f32.mrb[0].mxu0
    %v882 = vadd.f32 %v714, %v881
    %v883 = vpop.f32.mrb[0].mxu0
    %884 = vmatprep.mubr.bf16.mxu0 0
    %885 = vmatmul.mubr.bf16.gmra.mrb[0].mxu0 %v688
    %v886 = vpop.f32.mrb[0].mxu0
    %v887 = vadd.f32 %v714, %v886
    %v888 = vpop.f32.mrb[0].mxu0
    %v889 = vpop.f32.mrb[0].mxu0
    %v890 = vadd.f32 %v714, %v889
    %v891 = vpop.f32.mrb[0].mxu0
    %892 = vmatprep.mubr.bf16.mxu0 0
    %893 = vmatmul.mubr.bf16.gmra.mrb[0].mxu0 %v689
    %v894 = vpop.f32.mrb[0].mxu0
    %v895 = vadd.f32 %v714, %v894
    %v896 = vpop.f32.mrb[0].mxu0
    %v897 = vpop.f32.mrb[0].mxu0
    %v898 = vadd.f32 %v714, %v897
    %v899 = vpop.f32.mrb[0].mxu0
    %900 = vmatprep.mubr.bf16.mxu0 0
    %901 = vmatmul.mubr.bf16.gmra.mrb[0].mxu0 %v690
    %v902 = vpop.f32.mrb[0].mxu0
    %v903 = vadd.f32 %v714, %v902
    %v904 = vpop.f32.mrb[0].mxu0
    %v905 = vpop.f32.mrb[0].mxu0
    %v906 = vadd.f32 %v714, %v905
    %v907 = vpop.f32.mrb[0].mxu0
    %908 = vmatprep.mubr.bf16.mxu0 0
    %909 = vmatmul.mubr.bf16.gmra.mrb[0].mxu0 %v691
    %v910 = vpop.f32.mrb[0].mxu0
    %v911 = vadd.f32 %v714, %v910
    %v912 = vpop.f32.mrb[0].mxu0
    %v913 = vpop.f32.mrb[0].mxu0
    %v914 = vadd.f32 %v714, %v913
    %v915 = vpop.f32.mrb[0].mxu0
    %916 = vmatprep.mubr.bf16.mxu0 0
    %917 = vmatmul.mubr.bf16.gmra.mrb[0].mxu0 %v692
    %v918 = vpop.f32.mrb[0].mxu0
    %v919 = vadd.f32 %v714, %v918
    %v920 = vpop.f32.mrb[0].mxu0
    %v921 = vpop.f32.mrb[0].mxu0
    %v922 = vadd.f32 %v714, %v921
    %v923 = vpop.f32.mrb[0].mxu0
    %924 = vdwg.mxu0
    %v925 = vxor.u32 %v799, 2147483648
    %v926 = vxor.u32 %v802, 2147483648
    %v927 = vxor.u32 %v807, 2147483648
    %v928 = vxor.u32 %v810, 2147483648
    %v929 = vxor.u32 %v815, 2147483648
    %v930 = vxor.u32 %v818, 2147483648
    %v931 = vxor.u32 %v823, 2147483648
    %v932 = vxor.u32 %v826, 2147483648
    %v933 = vxor.u32 %v831, 2147483648
    %v934 = vxor.u32 %v834, 2147483648
    %v935 = vxor.u32 %v839, 2147483648
    %v936 = vxor.u32 %v842, 2147483648
    %v937 = vxor.u32 %v847, 2147483648
    %v938 = vxor.u32 %v850, 2147483648
    %v939 = vxor.u32 %v855, 2147483648
    %v940 = vxor.u32 %v858, 2147483648
    %v941 = vxor.u32 %v863, 2147483648
    %v942 = vxor.u32 %v866, 2147483648
    %v943 = vxor.u32 %v871, 2147483648
    %v944 = vxor.u32 %v874, 2147483648
    %v945 = vxor.u32 %v879, 2147483648
    %v946 = vxor.u32 %v882, 2147483648
    %v947 = vxor.u32 %v887, 2147483648
    %v948 = vxor.u32 %v890, 2147483648
    %v949 = vxor.u32 %v895, 2147483648
    %v950 = vxor.u32 %v898, 2147483648
    %v951 = vxor.u32 %v903, 2147483648
    %v952 = vxor.u32 %v906, 2147483648
    %v953 = vxor.u32 %v911, 2147483648
    %v954 = vxor.u32 %v914, 2147483648
    %v955 = vxor.u32 %v919, 2147483648
    %v956 = vxor.u32 %v922, 2147483648
    %v957 = vmul.f32 %v925, 1.442695
    %v958 = vpow.pop %v957
    %v959 = vmul.f32 %v926, 1.442695
    %v960 = vpow.pop %v959
    %v961 = vmul.f32 %v927, 1.442695
    %v962 = vpow.pop %v961
    %v963 = vmul.f32 %v928, 1.442695
    %v964 = vpow.pop %v963
    %v965 = vmul.f32 %v929, 1.442695
    %v966 = vpow.pop %v965
    %v967 = vmul.f32 %v930, 1.442695
    %v968 = vpow.pop %v967
    %v969 = vmul.f32 %v931, 1.442695
    %v970 = vpow.pop %v969
    %v971 = vmul.f32 %v932, 1.442695
    %v972 = vpow.pop %v971
    %v973 = vmul.f32 %v933, 1.442695
    %v974 = vpow.pop %v973
    %v975 = vmul.f32 %v934, 1.442695
    %v976 = vpow.pop %v975
    %v977 = vmul.f32 %v935, 1.442695
    %v978 = vpow.pop %v977
    %v979 = vmul.f32 %v936, 1.442695
    %v980 = vpow.pop %v979
    %v981 = vmul.f32 %v937, 1.442695
    %v982 = vpow.pop %v981
    %v983 = vmul.f32 %v938, 1.442695
    %v984 = vpow.pop %v983
    %v985 = vmul.f32 %v939, 1.442695
    %v986 = vpow.pop %v985
    %v987 = vmul.f32 %v940, 1.442695
    %v988 = vpow.pop %v987
    %v989 = vmul.f32 %v941, 1.442695
    %v990 = vpow.pop %v989
    %v991 = vmul.f32 %v942, 1.442695
    %v992 = vpow.pop %v991
    %v993 = vmul.f32 %v943, 1.442695
    %v994 = vpow.pop %v993
    %v995 = vmul.f32 %v944, 1.442695
    %v996 = vpow.pop %v995
    %v997 = vmul.f32 %v945, 1.442695
    %v998 = vpow.pop %v997
    %v999 = vmul.f32 %v946, 1.442695
    %v1000 = vpow.pop %v999
    %v1001 = vmul.f32 %v947, 1.442695
    %v1002 = vpow.pop %v1001
    %v1003 = vmul.f32 %v948, 1.442695
    %v1004 = vpow.pop %v1003
    %v1005 = vmul.f32 %v949, 1.442695
    %v1006 = vpow.pop %v1005
    %v1007 = vmul.f32 %v950, 1.442695
    %v1008 = vpow.pop %v1007
    %v1009 = vmul.f32 %v951, 1.442695
    %v1010 = vpow.pop %v1009
    %v1011 = vmul.f32 %v952, 1.442695
    %v1012 = vpow.pop %v1011
    %v1013 = vmul.f32 %v953, 1.442695
    %v1014 = vpow.pop %v1013
    %v1015 = vmul.f32 %v954, 1.442695
    %v1016 = vpow.pop %v1015
    %v1017 = vmul.f32 %v955, 1.442695
    %v1018 = vpow.pop %v1017
    %v1019 = vmul.f32 %v956, 1.442695
    %v1020 = vpow.pop %v1019
    %v1021 = vadd.f32 %v958, 1.0
    %v1022 = vadd.f32 %v960, 1.0
    %v1023 = vadd.f32 %v962, 1.0
    %v1024 = vadd.f32 %v964, 1.0
    %v1025 = vadd.f32 %v966, 1.0
    %v1026 = vadd.f32 %v968, 1.0
    %v1027 = vadd.f32 %v970, 1.0
    %v1028 = vadd.f32 %v972, 1.0
    %v1029 = vadd.f32 %v974, 1.0
    %v1030 = vadd.f32 %v976, 1.0
    %v1031 = vadd.f32 %v978, 1.0
    %v1032 = vadd.f32 %v980, 1.0
    %v1033 = vadd.f32 %v982, 1.0
    %v1034 = vadd.f32 %v984, 1.0
    %v1035 = vadd.f32 %v986, 1.0
    %v1036 = vadd.f32 %v988, 1.0
    %v1037 = vadd.f32 %v990, 1.0
    %v1038 = vadd.f32 %v992, 1.0
    %v1039 = vadd.f32 %v994, 1.0
    %v1040 = vadd.f32 %v996, 1.0
    %v1041 = vadd.f32 %v998, 1.0
    %v1042 = vadd.f32 %v1000, 1.0
    %v1043 = vadd.f32 %v1002, 1.0
    %v1044 = vadd.f32 %v1004, 1.0
    %v1045 = vadd.f32 %v1006, 1.0
    %v1046 = vadd.f32 %v1008, 1.0
    %v1047 = vadd.f32 %v1010, 1.0
    %v1048 = vadd.f32 %v1012, 1.0
    %v1049 = vadd.f32 %v1014, 1.0
    %v1050 = vadd.f32 %v1016, 1.0
    %v1051 = vadd.f32 %v1018, 1.0
    %v1052 = vadd.f32 %v1020, 1.0
    %v1053 = vrcp.pop %v1021
    %v1054 = vmul.f32 1.0, %v1053
    %v1055 = vrcp.pop %v1022
    %v1056 = vmul.f32 1.0, %v1055
    %v1057 = vrcp.pop %v1023
    %v1058 = vmul.f32 1.0, %v1057
    %v1059 = vrcp.pop %v1024
    %v1060 = vmul.f32 1.0, %v1059
    %v1061 = vrcp.pop %v1025
    %v1062 = vmul.f32 1.0, %v1061
    %v1063 = vrcp.pop %v1026
    %v1064 = vmul.f32 1.0, %v1063
    %v1065 = vrcp.pop %v1027
    %v1066 = vmul.f32 1.0, %v1065
    %v1067 = vrcp.pop %v1028
    %v1068 = vmul.f32 1.0, %v1067
    %v1069 = vrcp.pop %v1029
    %v1070 = vmul.f32 1.0, %v1069
    %v1071 = vrcp.pop %v1030
    %v1072 = vmul.f32 1.0, %v1071
    %v1073 = vrcp.pop %v1031
    %v1074 = vmul.f32 1.0, %v1073
    %v1075 = vrcp.pop %v1032
    %v1076 = vmul.f32 1.0, %v1075
    %v1077 = vrcp.pop %v1033
    %v1078 = vmul.f32 1.0, %v1077
    %v1079 = vrcp.pop %v1034
    %v1080 = vmul.f32 1.0, %v1079
    %v1081 = vrcp.pop %v1035
    %v1082 = vmul.f32 1.0, %v1081
    %v1083 = vrcp.pop %v1036
    %v1084 = vmul.f32 1.0, %v1083
    %v1085 = vrcp.pop %v1037
    %v1086 = vmul.f32 1.0, %v1085
    %v1087 = vrcp.pop %v1038
    %v1088 = vmul.f32 1.0, %v1087
    %v1089 = vrcp.pop %v1039
    %v1090 = vmul.f32 1.0, %v1089
    %v1091 = vrcp.pop %v1040
    %v1092 = vmul.f32 1.0, %v1091
    %v1093 = vrcp.pop %v1041
    %v1094 = vmul.f32 1.0, %v1093
    %v1095 = vrcp.pop %v1042
    %v1096 = vmul.f32 1.0, %v1095
    %v1097 = vrcp.pop %v1043
    %v1098 = vmul.f32 1.0, %v1097
    %v1099 = vrcp.pop %v1044
    %v1100 = vmul.f32 1.0, %v1099
    %v1101 = vrcp.pop %v1045
    %v1102 = vmul.f32 1.0, %v1101
    %v1103 = vrcp.pop %v1046
    %v1104 = vmul.f32 1.0, %v1103
    %v1105 = vrcp.pop %v1047
    %v1106 = vmul.f32 1.0, %v1105
    %v1107 = vrcp.pop %v1048
    %v1108 = vmul.f32 1.0, %v1107
    %v1109 = vrcp.pop %v1049
    %v1110 = vmul.f32 1.0, %v1109
    %v1111 = vrcp.pop %v1050
    %v1112 = vmul.f32 1.0, %v1111
    %v1113 = vrcp.pop %v1051
    %v1114 = vmul.f32 1.0, %v1113
    %v1115 = vrcp.pop %v1052
    %v1116 = vmul.f32 1.0, %v1115
    %1117 = vst [vmem:[#allocation2] sm:$0xff] %v1054
    %1118 = vst [vmem:[#allocation2 + $0x8] sm:$0xff] %v1056
    %1119 = vst [vmem:[#allocation2 + $0x10] sm:$0xff] %v1058
    %1120 = vst [vmem:[#allocation2 + $0x18] sm:$0xff] %v1060
    %1121 = vst [vmem:[#allocation2 + $0x20] sm:$0xff] %v1062
    %1122 = vst [vmem:[#allocation2 + $0x28] sm:$0xff] %v1064
    %1123 = vst [vmem:[#allocation2 + $0x30] sm:$0xff] %v1066
    %1124 = vst [vmem:[#allocation2 + $0x38] sm:$0xff] %v1068
    %1125 = vst [vmem:[#allocation2 + $0x40] sm:$0xff] %v1070
    %1126 = vst [vmem:[#allocation2 + $0x48] sm:$0xff] %v1072
    %1127 = vst [vmem:[#allocation2 + $0x50] sm:$0xff] %v1074
    %1128 = vst [vmem:[#allocation2 + $0x58] sm:$0xff] %v1076
    %1129 = vst [vmem:[#allocation2 + $0x60] sm:$0xff] %v1078
    %1130 = vst [vmem:[#allocation2 + $0x68] sm:$0xff] %v1080
    %1131 = vst [vmem:[#allocation2 + $0x70] sm:$0xff] %v1082
    %1132 = vst [vmem:[#allocation2 + $0x78] sm:$0xff] %v1084
    %1133 = vst [vmem:[#allocation2 + $0x80] sm:$0xff] %v1086
    %1134 = vst [vmem:[#allocation2 + $0x88] sm:$0xff] %v1088
    %1135 = vst [vmem:[#allocation2 + $0x90] sm:$0xff] %v1090
    %1136 = vst [vmem:[#allocation2 + $0x98] sm:$0xff] %v1092
    %1137 = vst [vmem:[#allocation2 + $0xa0] sm:$0xff] %v1094
    %1138 = vst [vmem:[#allocation2 + $0xa8] sm:$0xff] %v1096
    %1139 = vst [vmem:[#allocation2 + $0xb0] sm:$0xff] %v1098
    %1140 = vst [vmem:[#allocation2 + $0xb8] sm:$0xff] %v1100
    %1141 = vst [vmem:[#allocation2 + $0xc0] sm:$0xff] %v1102
    %1142 = vst [vmem:[#allocation2 + $0xc8] sm:$0xff] %v1104
    %1143 = vst [vmem:[#allocation2 + $0xd0] sm:$0xff] %v1106
    %1144 = vst [vmem:[#allocation2 + $0xd8] sm:$0xff] %v1108
    %1145 = vst [vmem:[#allocation2 + $0xe0] sm:$0xff] %v1110
    %1146 = vst [vmem:[#allocation2 + $0xe8] sm:$0xff] %v1112
    %1147 = vst [vmem:[#allocation2 + $0xf0] sm:$0xff] %v1114
    %1148 = vst [vmem:[#allocation2 + $0xf8] sm:$0xff] %v1116
    // Predicated region
    $region30: #{tpu_custom_call.1} parent=1 // pred_check
      _
    $region31: #{tpu_custom_call.1} parent=1 // pred_check_branch
      %1150 = sbr.rel (0) target = $region33
    $region32: #{tpu_custom_call.1} parent=1 // pred_region
      %s1152 = ssub.s32 4096, 4096
      %1153 = vsyncadd [#allocation3], %s1152
      %s1154 = sshll.u32 [#allocation2], 4
      %s1155 = int_to_ptr.vmem [resolvable:$true] %s1154
      %1160 = dma.vmem_to_hbm [thread:$0]  %s1155, 4096, %s7, [#allocation3], 128, 128, 8
    $region33: #{tpu_custom_call.1} parent=1 // pred_fallthru
      _
    // Predicated region
    $region34: #{tpu_custom_call.1} parent=1 // pred_check
      _
    $region35: #{tpu_custom_call.1} parent=1 // pred_check_branch
      %1162 = sbr.rel (0) target = $region37
    $region36: #{tpu_custom_call.1} parent=1 // pred_region
      %1163 = dma.done [#allocation3], 4096
    $region37: #{tpu_custom_call.1} parent=1 // pred_fallthru
      _
    %1164 = vsyncpa [#allocation3], 1

</llo_original>
